<compile_context>
chip_gen: v5e
topology: v5e:2x2
jax: 0.10.0
libtpu: 0.0.40
codegen_flags: <defaults>
</compile_context>

<pallas_src>
import functools

import numpy as np
import jax
import jax.numpy as jnp
from jax import lax
from jax.experimental import pallas as pl
from jax.experimental.pallas import tpu as pltpu


def _cdiv(a, b):
    return -(-a // b)


def _vmem_capacity_bytes():
    try:
        info = pltpu.get_tpu_info()
        cap = getattr(info, "vmem_capacity_bytes", None)
        if cap:
            return int(cap)
    except Exception:
        pass
    return 64 * 1024 * 1024          # conservative default (v7x-sized VMEM)


def _num_tensorcores():
    try:
        info = pltpu.get_tpu_info()
        for name in ("num_cores", "num_tensorcores", "tensorcore_count", "core_count"):
            v = getattr(info, name, None)
            if isinstance(v, int) and v > 0:
                return v
    except Exception:
        pass
    try:
        v = getattr(jax.devices()[0], "num_cores", None)
        if isinstance(v, int) and v > 0:
            return v
    except Exception:
        pass
    return 1


def _is_v5e():
    try:
        kind = jax.devices()[0].device_kind.lower()
        return ("v5e" in kind) or ("v5 lite" in kind) or ("v5litepod" in kind)
    except Exception:
        return False


def _admm_kernel(minv_ref, xb0_ref, lb_ref, ub_ref, x_out_ref, *scratch,
                 n_x, n_batch, rho, max_iters, eps_abs, eps_rel,
                 check_termination, any_lb, any_ub, reduce_mean, use_stride0):
    """Batch-on-lane ADMM loop.

    Layouts: minv_ref is (n_x, n_x_pad, TB) with the contraction index leading,
    vectors are (n_x_pad, TB).  Every per-iteration op is lane-dense over the
    batch; the per-batch mat-vec is an unrolled chain of lane-wide FMAs.
    """
    y_sc = scratch[0] if scratch else None
    n_x_pad, tb = x_out_ref.shape
    zeros = jnp.zeros((n_x_pad, tb), jnp.float32)
    sqrt_nx = float(np.sqrt(n_x))

    # Mean reductions divide by the number of *real* batch lanes in this tile
    # (zero-padded lanes contribute exactly 0 to all the sums).
    t = pl.program_id(0)
    n_real = jnp.clip(n_batch - t * tb, 1, tb).astype(jnp.float32)
    inv_real = 1.0 / n_real

    unroll_max = 128

    def contract(row_static, row_dyn, n_c, init):
        """init[i,b] + sum_j minv[j,i,b] * row(j)[.,b] : slab FMAs, no XLU."""
        if n_c <= unroll_max:
            n_acc = 4 if n_c >= 8 else 1          # interleaved partial sums (ILP)
            accs = [init] + [zeros] * (n_acc - 1)
            for j in range(n_c):                  # static unroll
                accs[j % n_acc] = accs[j % n_acc] + minv_ref[j] * row_static(j)
            out = accs[0]
            for a in accs[1:]:
                out = out + a
            return out
        # Large-n fallback: fori_loop of slab FMAs, no (n_c, n_x_pad, TB) temp.
        def body(j, acc):
            return acc + minv_ref[j] * row_dyn(j)
        return lax.fori_loop(0, n_c, body, init, unroll=8)

    def loop_cond(c):
        i, _x, _z, _u, done = c
        return jnp.logical_and(i < max_iters, done == 0)

    def loop_body(c):
        i, x, z, u, _done = c
        y = z - u

        if rho == 0.0:
            # No inequality constraints: x is the constant KKT solve.
            x_new = xb0_ref[...]
        else:
            if use_stride0:
                # One VMEM store of y per iteration, then stride-0 sublane
                # broadcast loads of each row: the per-term broadcast rides the
                # vector-load slot instead of VALU/XLU.
                y_sc[...] = y

                def row_static(j):
                    return y_sc[pl.ds(j, n_x_pad, stride=0)]
                row_dyn = row_static
            else:
                def row_static(j):
                    return y[j:j + 1, :]

                def row_dyn(j):
                    return lax.dynamic_slice_in_dim(y, j, 1, axis=0)
            x_new = contract(row_static, row_dyn, n_x, xb0_ref[...])

        z_prev = z
        z_new = x_new + u
        if any_lb:                                # direct clamp (2 VALU ops)
            z_new = jnp.maximum(z_new, lb_ref[...])
        if any_ub:
            z_new = jnp.minimum(z_new, ub_ref[...])
        if rho == 0.0:
            z_prev = z_new
        r = x_new - z_new
        u_new = u + r

        def check():
            def lane_norm(v):
                return jnp.sqrt(jnp.sum(v * v, axis=0, keepdims=True))   # (1, TB)

            def lane_mean(nrm):
                return jnp.sum(nrm) * inv_real

            def lane_reduce(nrm):
                return lane_mean(nrm) if reduce_mean else jnp.max(nrm)

            primal_error = lane_reduce(lane_norm(r))
            dual_error = abs(rho) * lane_reduce(lane_norm(z_new - z_prev))
            x_norm = lane_mean(lane_norm(x_new))
            z_norm = lane_mean(lane_norm(z_new))
            y_norm = lane_mean(lane_norm(y))
            tol_primal = eps_abs * sqrt_nx + eps_rel * jnp.maximum(x_norm, z_norm)
            tol_dual = eps_abs * sqrt_nx + eps_rel * y_norm
            stop = jnp.logical_and(primal_error < tol_primal, dual_error < tol_dual)
            return stop.astype(jnp.int32)

        if check_termination == 1:
            done_new = check()
        else:
            done_new = lax.cond((i % check_termination) == 0, check,
                                lambda: jnp.int32(0))
        return i + 1, x_new, z_new, u_new, done_new

    init = (jnp.int32(0), zeros, zeros, zeros, jnp.int32(0))
    _, x_fin, _, _, _ = lax.while_loop(loop_cond, loop_body, init)
    x_out_ref[...] = x_fin


def solve_box_qp(Q, p, A, b, lb, ub, control):
    max_iters = int(control.get('max_iters', 1000))
    eps_abs = float(control.get('eps_abs', 0.001))
    eps_rel = float(control.get('eps_rel', 0.001))
    check_termination = int(control.get('check_termination', 1))
    rho = float(control.get('rho', 1))
    reduce_mode = control.get('reduce', 'mean')
    # TODO(synk): the 'unroll'/TorchLU differentiable path and the custom
    # autograd backward (fixed_point / kkt) are not implemented; forward only.

    n_batch = int(Q.shape[0])
    n_x = int(p.shape[1])
    n_eq = 0 if (A is None or A.size == 0) else int(A.shape[1])
    any_eq = n_eq > 0

    any_lb = bool(jnp.max(lb) > -jnp.inf)
    any_ub = bool(jnp.min(ub) < jnp.inf)
    any_ineq = any_lb or any_ub
    if not any_ineq:
        rho = 0.0

    # ---- one-time KKT "factorization" (plain-JAX host glue) -----------------
    # TODO(synk): an explicit inverse of the saddle-point KKT matrix is
    # numerically weaker than the pivoted LU used by torch for ill-conditioned
    # Q / nearly dependent A rows.
    Qf = Q.astype(jnp.float32)
    pf = p.astype(jnp.float32)
    Id = jnp.eye(n_x, dtype=jnp.float32)[None]
    M = Qf + rho * Id
    if any_eq:
        A32 = A.astype(jnp.float32)
        zero = jnp.zeros((n_batch, n_eq, n_eq), jnp.float32)
        M = jnp.concatenate([
            jnp.concatenate([M, jnp.swapaxes(A32, 1, 2)], axis=2),
            jnp.concatenate([A32, zero], axis=2)], axis=1)
    Minv = jnp.linalg.inv(M)
    Minv_xx = Minv[:, :n_x, :n_x]

    # Fold loop constants on the host:  x = (rho*Minv_xx) @ y + xb0.
    minv_rho = rho * Minv_xx
    xb0 = -jnp.matmul(Minv_xx, pf)
    if any_eq:
        xb0 = xb0 + jnp.matmul(Minv[:, :n_x, n_x:], b.astype(jnp.float32))

    n_x_pad = _cdiv(n_x, 8) * 8

    cap = _vmem_capacity_bytes()
    ncores = _num_tensorcores()
    budget = int(0.35 * cap)                 # tile budget (~22 MiB on v7x)
    vmem_ceiling = int(0.75 * cap)           # scoped VMEM limit (~48 MiB on v7x)
    lane_cap = 1024 if _is_v5e() else 4096   # keep TB modest on v5e (1 vst slot)
    reduce_mean = (reduce_mode == 'mean')

    def pad_to(arr, shape):
        return jnp.pad(arr, [(0, s - d) for d, s in zip(arr.shape, shape)])

    def run(use_buffered, use_stride0):
        nbuf_minv = 1 if use_buffered else 2
        per_lane = 4 * (nbuf_minv * n_x * n_x_pad   # resident Minv tile(s)
                        + 2 * 4 * n_x_pad           # xb0/lb/ub/out double-buffered
                        + 16 * n_x_pad)             # loop state, temps, scratch
        tb_cap = max(1, budget // per_lane)
        # TODO(synk): for very large n_x (Minv row-slab > VMEM budget at 128
        # lanes) the contraction would need to be streamed from HBM per
        # iteration; not implemented.

        # Force >=2 lane-dense batch tiles on multi-TensorCore parts so the
        # "parallel" grid axis can be sharded across cores.
        want_tiles = ncores if (ncores >= 2 and n_batch > 256) else 1
        tb = min(tb_cap, lane_cap, _cdiv(n_batch, want_tiles))
        if tb >= n_batch and want_tiles == 1:
            tb = n_batch
            b_pad = n_batch
        else:
            tb_up = _cdiv(tb, 128) * 128
            tb = tb_up if tb_up <= min(tb_cap, lane_cap) else max(128, (tb // 128) * 128)
            b_pad = _cdiv(n_batch, tb) * tb
        num_tiles = b_pad // tb
        tile_bytes = tb * per_lane
        vmem_limit = int(min(vmem_ceiling, max(32 * 1024 * 1024, 1.5 * tile_bytes)))
        # NOTE(layout): batch sits on the lane axis; for tiny batches (e.g.
        # n_batch=2) most of the 128-lane vreg width is idle.
        # NOTE(semantics): when num_tiles > 1 the early-exit test is per
        # batch-tile, not global as in torch.

        # Layout: contraction index leading, variable index on sublanes (padded
        # to a multiple of 8), batch on lanes.  Zero padding is exact: padded
        # rows and padded batch lanes stay identically 0 through the recursion.
        minv_k = pad_to(jnp.transpose(minv_rho, (2, 1, 0)).astype(jnp.float32),
                        (n_x, n_x_pad, b_pad))
        xb0_t = pad_to(xb0[..., 0].T.astype(jnp.float32), (n_x_pad, b_pad))
        lb_t = pad_to(lb[..., 0].T.astype(jnp.float32), (n_x_pad, b_pad))
        ub_t = pad_to(ub[..., 0].T.astype(jnp.float32), (n_x_pad, b_pad))

        minv_kwargs = {}
        if use_buffered:
            # Single-buffer the big constant input; its per-tile DMA is hidden
            # behind hundreds of ADMM iterations of compute.
            minv_kwargs['pipeline_mode'] = pl.Buffered(1)
        in_specs = [
            pl.BlockSpec((n_x, n_x_pad, tb), lambda ti: (0, 0, ti), **minv_kwargs),
            pl.BlockSpec((n_x_pad, tb), lambda ti: (0, ti)),
            pl.BlockSpec((n_x_pad, tb), lambda ti: (0, ti)),
            pl.BlockSpec((n_x_pad, tb), lambda ti: (0, ti)),
        ]
        scratch_shapes = ([pltpu.VMEM((n_x_pad, tb), jnp.float32)]
                          if use_stride0 else [])

        kernel = functools.partial(
            _admm_kernel, n_x=n_x, n_batch=n_batch, rho=rho,
            max_iters=max_iters, eps_abs=eps_abs, eps_rel=eps_rel,
            check_termination=check_termination, any_lb=any_lb, any_ub=any_ub,
            reduce_mean=reduce_mean, use_stride0=use_stride0)

        return pl.pallas_call(
            kernel,
            out_shape=jax.ShapeDtypeStruct((n_x_pad, b_pad), jnp.float32),
            grid=(num_tiles,),
            in_specs=in_specs,
            out_specs=pl.BlockSpec((n_x_pad, tb), lambda ti: (0, ti)),
            scratch_shapes=scratch_shapes,
            compiler_params=pltpu.CompilerParams(
                dimension_semantics=("parallel",),
                vmem_limit_bytes=vmem_limit),
        )(minv_k, xb0_t, lb_t, ub_t)

    # Try the most optimized configuration first; fall back if the installed
    # Pallas/Mosaic version rejects Buffered(1) or stride-0 broadcast loads.
    x_pad = None
    last_err = None
    for cfg in ((True, True), (True, False), (False, False)):
        try:
            x_pad = run(*cfg)
            break
        except Exception as e:           # noqa: BLE001 - conservative fallback
            last_err = e
    if x_pad is None:
        raise last_err

    return x_pad[:n_x, :n_batch].T[..., None]      # (B, n_x, 1), matches torch


class SolveBoxQP:
    """JAX/Pallas counterpart of the torch SolveBoxQP module (forward only)."""

    def __init__(self, control):
        self.control = control

    def __call__(self, Q, p, A, b, lb, ub):
        return solve_box_qp(Q, p, A, b, lb, ub, self.control)


if __name__ == "__main__":
    key = jax.random.PRNGKey(0)
    n_batch, n_x, n_eq = 2, 16, 4
    k1, k2, k3, k4 = jax.random.split(key, 4)

    L = jax.random.normal(k1, (n_batch, n_x, n_x), dtype=jnp.float32)
    Q = jnp.matmul(L, jnp.swapaxes(L, 1, 2)) / n_x + jnp.eye(n_x, dtype=jnp.float32)[None]
    p = jax.random.normal(k2, (n_batch, n_x, 1), dtype=jnp.float32)
    A = jax.random.normal(k3, (n_batch, n_eq, n_x), dtype=jnp.float32)
    x_feas = jax.random.uniform(k4, (n_batch, n_x, 1), minval=-0.5, maxval=0.5,
                                dtype=jnp.float32)
    b = jnp.matmul(A, x_feas)
    lb = -jnp.ones((n_batch, n_x, 1), dtype=jnp.float32)
    ub = jnp.ones((n_batch, n_x, 1), dtype=jnp.float32)

    control = dict(max_iters=200, eps_abs=1e-3, eps_rel=1e-3,
                   check_termination=1, rho=1.0, reduce='mean')

    model = SolveBoxQP(control)
    x = model(Q, p, A, b, lb, ub)
    x = jax.block_until_ready(x)

    assert x.shape == (n_batch, n_x, 1)
    assert bool(jnp.all(jnp.isfinite(x)))
    # equality constraints should be (nearly) satisfied by the KKT solve
    assert float(jnp.max(jnp.abs(jnp.matmul(A, x) - b))) < 1e-2
    print("KERNEL_OK")
</pallas_src>

<mosaic_0001>
module attributes {stable_mosaic.version = 11 : i64} {
  func.func @_admm_kernel(%arg0: i32, %arg1: memref<16x16x2xf32, #tpu.memory_space<vmem>>, %arg2: memref<16x2xf32, #tpu.memory_space<vmem>>, %arg3: memref<16x2xf32, #tpu.memory_space<vmem>>, %arg4: memref<16x2xf32, #tpu.memory_space<vmem>>, %arg5: memref<16x2xf32, #tpu.memory_space<vmem>>, %arg6: memref<16x2xf32, #tpu.memory_space<vmem>>) attributes {dimension_semantics = [#tpu.dimension_semantics<parallel>], iteration_bounds = array<i64: 1>, scalar_prefetch = 0 : i64, scratch_operands = 1 : i64, tpu.core_type = #tpu.core_type<tc>, window_params = [{pipeline_mode = #tpu.pipeline_mode<synchronous>, transform_indices = @transform_0, window_bounds = array<i64: 16, 16, 2>}, {transform_indices = @transform_1, window_bounds = array<i64: 16, 2>}, {transform_indices = @transform_2, window_bounds = array<i64: 16, 2>}, {transform_indices = @transform_3, window_bounds = array<i64: 16, 2>}, {transform_indices = @transform_4, window_bounds = array<i64: 16, 2>}]} {
    %cst = arith.constant 0.000000e+00 : f32
    %0 = vector.broadcast %cst : f32 to vector<16x2xf32>
    %c2_i32 = arith.constant 2 : i32
    %1 = arith.muli %arg0, %c2_i32 : i32
    %c2_i32_0 = arith.constant 2 : i32
    %2 = arith.subi %c2_i32_0, %1 : i32
    %c1_i32 = arith.constant 1 : i32
    %c2_i32_1 = arith.constant 2 : i32
    %3 = arith.maxsi %c1_i32, %2 : i32
    %4 = arith.minsi %c2_i32_1, %3 : i32
    %5 = arith.sitofp %4 : i32 to f32
    %cst_2 = arith.constant 1.000000e+00 : f32
    %6 = arith.divf %cst_2, %5 : f32
    %c0_i32 = arith.constant 0 : i32
    %c0_i32_3 = arith.constant 0 : i32
    %7:5 = scf.while (%arg7 = %c0_i32, %arg8 = %0, %arg9 = %0, %arg10 = %0, %arg11 = %c0_i32_3) : (i32, vector<16x2xf32>, vector<16x2xf32>, vector<16x2xf32>, i32) -> (i32, vector<16x2xf32>, vector<16x2xf32>, vector<16x2xf32>, i32) {
      %c200_i32 = arith.constant 200 : i32
      %9 = arith.cmpi slt, %arg7, %c200_i32 : i32
      %c0_i32_5 = arith.constant 0 : i32
      %10 = arith.cmpi eq, %arg11, %c0_i32_5 : i32
      %11 = arith.andi %9, %10 : i1
      scf.condition(%11) %arg7, %arg8, %arg9, %arg10, %arg11 : i32, vector<16x2xf32>, vector<16x2xf32>, vector<16x2xf32>, i32
    } do {
    ^bb0(%arg7: i32, %arg8: vector<16x2xf32>, %arg9: vector<16x2xf32>, %arg10: vector<16x2xf32>, %arg11: i32):
      %9 = arith.subf %arg9, %arg10 : vector<16x2xf32>
      %c0_5 = arith.constant 0 : index
      %c0_6 = arith.constant 0 : index
      %10 = vector.load %arg6[%c0_5, %c0_6] : memref<16x2xf32, #tpu.memory_space<vmem>>, vector<16x2xf32>
      tpu.vector_store %arg6[%c0_5, %c0_6], %9 {strides = array<i32>} : memref<16x2xf32, #tpu.memory_space<vmem>>, vector<16x2xf32>,
      %c0_7 = arith.constant 0 : index
      %c0_8 = arith.constant 0 : index
      %11 = vector.load %arg2[%c0_7, %c0_8] : memref<16x2xf32, #tpu.memory_space<vmem>>, vector<16x2xf32>
      %c0_9 = arith.constant 0 : index
      %c0_10 = arith.constant 0 : index
      %c0_11 = arith.constant 0 : index
      %12 = vector.load %arg1[%c0_9, %c0_10, %c0_11] : memref<16x16x2xf32, #tpu.memory_space<vmem>>, vector<1x16x2xf32>
      %13 = vector.shape_cast %12 : vector<1x16x2xf32> to vector<16x2xf32>
      %c0_12 = arith.constant 0 : index
      %c0_13 = arith.constant 0 : index
      %14 = tpu.strided_load %arg6[%c0_12, %c0_13] {strides = array<i32: 0, 1>} : memref<16x2xf32, #tpu.memory_space<vmem>>, vector<16x2xf32>
      %15 = arith.mulf %13, %14 : vector<16x2xf32>
      %16 = arith.addf %11, %15 : vector<16x2xf32>
      %c1 = arith.constant 1 : index
      %c0_14 = arith.constant 0 : index
      %c0_15 = arith.constant 0 : index
      %17 = vector.load %arg1[%c1, %c0_14, %c0_15] : memref<16x16x2xf32, #tpu.memory_space<vmem>>, vector<1x16x2xf32>
      %18 = vector.shape_cast %17 : vector<1x16x2xf32> to vector<16x2xf32>
      %c1_16 = arith.constant 1 : index
      %c0_17 = arith.constant 0 : index
      %19 = tpu.strided_load %arg6[%c1_16, %c0_17] {strides = array<i32: 0, 1>} : memref<16x2xf32, #tpu.memory_space<vmem>>, vector<16x2xf32>
      %20 = arith.mulf %18, %19 : vector<16x2xf32>
      %21 = arith.addf %0, %20 : vector<16x2xf32>
      %c2 = arith.constant 2 : index
      %c0_18 = arith.constant 0 : index
      %c0_19 = arith.constant 0 : index
      %22 = vector.load %arg1[%c2, %c0_18, %c0_19] : memref<16x16x2xf32, #tpu.memory_space<vmem>>, vector<1x16x2xf32>
      %23 = vector.shape_cast %22 : vector<1x16x2xf32> to vector<16x2xf32>
      %c2_20 = arith.constant 2 : index
      %c0_21 = arith.constant 0 : index
      %24 = tpu.strided_load %arg6[%c2_20, %c0_21] {strides = array<i32: 0, 1>} : memref<16x2xf32, #tpu.memory_space<vmem>>, vector<16x2xf32>
      %25 = arith.mulf %23, %24 : vector<16x2xf32>
      %26 = arith.addf %0, %25 : vector<16x2xf32>
      %c3 = arith.constant 3 : index
      %c0_22 = arith.constant 0 : index
      %c0_23 = arith.constant 0 : index
      %27 = vector.load %arg1[%c3, %c0_22, %c0_23] : memref<16x16x2xf32, #tpu.memory_space<vmem>>, vector<1x16x2xf32>
      %28 = vector.shape_cast %27 : vector<1x16x2xf32> to vector<16x2xf32>
      %c3_24 = arith.constant 3 : index
      %c0_25 = arith.constant 0 : index
      %29 = tpu.strided_load %arg6[%c3_24, %c0_25] {strides = array<i32: 0, 1>} : memref<16x2xf32, #tpu.memory_space<vmem>>, vector<16x2xf32>
      %30 = arith.mulf %28, %29 : vector<16x2xf32>
      %31 = arith.addf %0, %30 : vector<16x2xf32>
      %c4 = arith.constant 4 : index
      %c0_26 = arith.constant 0 : index
      %c0_27 = arith.constant 0 : index
      %32 = vector.load %arg1[%c4, %c0_26, %c0_27] : memref<16x16x2xf32, #tpu.memory_space<vmem>>, vector<1x16x2xf32>
      %33 = vector.shape_cast %32 : vector<1x16x2xf32> to vector<16x2xf32>
      %c4_28 = arith.constant 4 : index
      %c0_29 = arith.constant 0 : index
      %34 = tpu.strided_load %arg6[%c4_28, %c0_29] {strides = array<i32: 0, 1>} : memref<16x2xf32, #tpu.memory_space<vmem>>, vector<16x2xf32>
      %35 = arith.mulf %33, %34 : vector<16x2xf32>
      %36 = arith.addf %16, %35 : vector<16x2xf32>
      %c5 = arith.constant 5 : index
      %c0_30 = arith.constant 0 : index
      %c0_31 = arith.constant 0 : index
      %37 = vector.load %arg1[%c5, %c0_30, %c0_31] : memref<16x16x2xf32, #tpu.memory_space<vmem>>, vector<1x16x2xf32>
      %38 = vector.shape_cast %37 : vector<1x16x2xf32> to vector<16x2xf32>
      %c5_32 = arith.constant 5 : index
      %c0_33 = arith.constant 0 : index
      %39 = tpu.strided_load %arg6[%c5_32, %c0_33] {strides = array<i32: 0, 1>} : memref<16x2xf32, #tpu.memory_space<vmem>>, vector<16x2xf32>
      %40 = arith.mulf %38, %39 : vector<16x2xf32>
      %41 = arith.addf %21, %40 : vector<16x2xf32>
      %c6 = arith.constant 6 : index
      %c0_34 = arith.constant 0 : index
      %c0_35 = arith.constant 0 : index
      %42 = vector.load %arg1[%c6, %c0_34, %c0_35] : memref<16x16x2xf32, #tpu.memory_space<vmem>>, vector<1x16x2xf32>
      %43 = vector.shape_cast %42 : vector<1x16x2xf32> to vector<16x2xf32>
      %c6_36 = arith.constant 6 : index
      %c0_37 = arith.constant 0 : index
      %44 = tpu.strided_load %arg6[%c6_36, %c0_37] {strides = array<i32: 0, 1>} : memref<16x2xf32, #tpu.memory_space<vmem>>, vector<16x2xf32>
      %45 = arith.mulf %43, %44 : vector<16x2xf32>
      %46 = arith.addf %26, %45 : vector<16x2xf32>
      %c7 = arith.constant 7 : index
      %c0_38 = arith.constant 0 : index
      %c0_39 = arith.constant 0 : index
      %47 = vector.load %arg1[%c7, %c0_38, %c0_39] : memref<16x16x2xf32, #tpu.memory_space<vmem>>, vector<1x16x2xf32>
      %48 = vector.shape_cast %47 : vector<1x16x2xf32> to vector<16x2xf32>
      %c7_40 = arith.constant 7 : index
      %c0_41 = arith.constant 0 : index
      %49 = tpu.strided_load %arg6[%c7_40, %c0_41] {strides = array<i32: 0, 1>} : memref<16x2xf32, #tpu.memory_space<vmem>>, vector<16x2xf32>
      %50 = arith.mulf %48, %49 : vector<16x2xf32>
      %51 = arith.addf %31, %50 : vector<16x2xf32>
      %c8 = arith.constant 8 : index
      %c0_42 = arith.constant 0 : index
      %c0_43 = arith.constant 0 : index
      %52 = vector.load %arg1[%c8, %c0_42, %c0_43] : memref<16x16x2xf32, #tpu.memory_space<vmem>>, vector<1x16x2xf32>
      %53 = vector.shape_cast %52 : vector<1x16x2xf32> to vector<16x2xf32>
      %c8_44 = arith.constant 8 : index
      %c0_45 = arith.constant 0 : index
      %54 = tpu.strided_load %arg6[%c8_44, %c0_45] {strides = array<i32: 0, 1>} : memref<16x2xf32, #tpu.memory_space<vmem>>, vector<16x2xf32>
      %55 = arith.mulf %53, %54 : vector<16x2xf32>
      %56 = arith.addf %36, %55 : vector<16x2xf32>
      %c9 = arith.constant 9 : index
      %c0_46 = arith.constant 0 : index
      %c0_47 = arith.constant 0 : index
      %57 = vector.load %arg1[%c9, %c0_46, %c0_47] : memref<16x16x2xf32, #tpu.memory_space<vmem>>, vector<1x16x2xf32>
      %58 = vector.shape_cast %57 : vector<1x16x2xf32> to vector<16x2xf32>
      %c9_48 = arith.constant 9 : index
      %c0_49 = arith.constant 0 : index
      %59 = tpu.strided_load %arg6[%c9_48, %c0_49] {strides = array<i32: 0, 1>} : memref<16x2xf32, #tpu.memory_space<vmem>>, vector<16x2xf32>
      %60 = arith.mulf %58, %59 : vector<16x2xf32>
      %61 = arith.addf %41, %60 : vector<16x2xf32>
      %c10 = arith.constant 10 : index
      %c0_50 = arith.constant 0 : index
      %c0_51 = arith.constant 0 : index
      %62 = vector.load %arg1[%c10, %c0_50, %c0_51] : memref<16x16x2xf32, #tpu.memory_space<vmem>>, vector<1x16x2xf32>
      %63 = vector.shape_cast %62 : vector<1x16x2xf32> to vector<16x2xf32>
      %c10_52 = arith.constant 10 : index
      %c0_53 = arith.constant 0 : index
      %64 = tpu.strided_load %arg6[%c10_52, %c0_53] {strides = array<i32: 0, 1>} : memref<16x2xf32, #tpu.memory_space<vmem>>, vector<16x2xf32>
      %65 = arith.mulf %63, %64 : vector<16x2xf32>
      %66 = arith.addf %46, %65 : vector<16x2xf32>
      %c11 = arith.constant 11 : index
      %c0_54 = arith.constant 0 : index
      %c0_55 = arith.constant 0 : index
      %67 = vector.load %arg1[%c11, %c0_54, %c0_55] : memref<16x16x2xf32, #tpu.memory_space<vmem>>, vector<1x16x2xf32>
      %68 = vector.shape_cast %67 : vector<1x16x2xf32> to vector<16x2xf32>
      %c11_56 = arith.constant 11 : index
      %c0_57 = arith.constant 0 : index
      %69 = tpu.strided_load %arg6[%c11_56, %c0_57] {strides = array<i32: 0, 1>} : memref<16x2xf32, #tpu.memory_space<vmem>>, vector<16x2xf32>
      %70 = arith.mulf %68, %69 : vector<16x2xf32>
      %71 = arith.addf %51, %70 : vector<16x2xf32>
      %c12 = arith.constant 12 : index
      %c0_58 = arith.constant 0 : index
      %c0_59 = arith.constant 0 : index
      %72 = vector.load %arg1[%c12, %c0_58, %c0_59] : memref<16x16x2xf32, #tpu.memory_space<vmem>>, vector<1x16x2xf32>
      %73 = vector.shape_cast %72 : vector<1x16x2xf32> to vector<16x2xf32>
      %c12_60 = arith.constant 12 : index
      %c0_61 = arith.constant 0 : index
      %74 = tpu.strided_load %arg6[%c12_60, %c0_61] {strides = array<i32: 0, 1>} : memref<16x2xf32, #tpu.memory_space<vmem>>, vector<16x2xf32>
      %75 = arith.mulf %73, %74 : vector<16x2xf32>
      %76 = arith.addf %56, %75 : vector<16x2xf32>
      %c13 = arith.constant 13 : index
      %c0_62 = arith.constant 0 : index
      %c0_63 = arith.constant 0 : index
      %77 = vector.load %arg1[%c13, %c0_62, %c0_63] : memref<16x16x2xf32, #tpu.memory_space<vmem>>, vector<1x16x2xf32>
      %78 = vector.shape_cast %77 : vector<1x16x2xf32> to vector<16x2xf32>
      %c13_64 = arith.constant 13 : index
      %c0_65 = arith.constant 0 : index
      %79 = tpu.strided_load %arg6[%c13_64, %c0_65] {strides = array<i32: 0, 1>} : memref<16x2xf32, #tpu.memory_space<vmem>>, vector<16x2xf32>
      %80 = arith.mulf %78, %79 : vector<16x2xf32>
      %81 = arith.addf %61, %80 : vector<16x2xf32>
      %c14 = arith.constant 14 : index
      %c0_66 = arith.constant 0 : index
      %c0_67 = arith.constant 0 : index
      %82 = vector.load %arg1[%c14, %c0_66, %c0_67] : memref<16x16x2xf32, #tpu.memory_space<vmem>>, vector<1x16x2xf32>
      %83 = vector.shape_cast %82 : vector<1x16x2xf32> to vector<16x2xf32>
      %c14_68 = arith.constant 14 : index
      %c0_69 = arith.constant 0 : index
      %84 = tpu.strided_load %arg6[%c14_68, %c0_69] {strides = array<i32: 0, 1>} : memref<16x2xf32, #tpu.memory_space<vmem>>, vector<16x2xf32>
      %85 = arith.mulf %83, %84 : vector<16x2xf32>
      %86 = arith.addf %66, %85 : vector<16x2xf32>
      %c15 = arith.constant 15 : index
      %c0_70 = arith.constant 0 : index
      %c0_71 = arith.constant 0 : index
      %87 = vector.load %arg1[%c15, %c0_70, %c0_71] : memref<16x16x2xf32, #tpu.memory_space<vmem>>, vector<1x16x2xf32>
      %88 = vector.shape_cast %87 : vector<1x16x2xf32> to vector<16x2xf32>
      %c15_72 = arith.constant 15 : index
      %c0_73 = arith.constant 0 : index
      %89 = tpu.strided_load %arg6[%c15_72, %c0_73] {strides = array<i32: 0, 1>} : memref<16x2xf32, #tpu.memory_space<vmem>>, vector<16x2xf32>
      %90 = arith.mulf %88, %89 : vector<16x2xf32>
      %91 = arith.addf %71, %90 : vector<16x2xf32>
      %92 = arith.addf %76, %81 : vector<16x2xf32>
      %93 = arith.addf %92, %86 : vector<16x2xf32>
      %94 = arith.addf %93, %91 : vector<16x2xf32>
      %95 = arith.addf %94, %arg10 : vector<16x2xf32>
      %c0_74 = arith.constant 0 : index
      %c0_75 = arith.constant 0 : index
      %96 = vector.load %arg3[%c0_74, %c0_75] : memref<16x2xf32, #tpu.memory_space<vmem>>, vector<16x2xf32>
      %97 = arith.maximumf %95, %96 : vector<16x2xf32>
      %c0_76 = arith.constant 0 : index
      %c0_77 = arith.constant 0 : index
      %98 = vector.load %arg4[%c0_76, %c0_77] : memref<16x2xf32, #tpu.memory_space<vmem>>, vector<16x2xf32>
      %99 = arith.minimumf %97, %98 : vector<16x2xf32>
      %100 = arith.subf %94, %99 : vector<16x2xf32>
      %101 = arith.addf %arg10, %100 : vector<16x2xf32>
      %102 = arith.mulf %100, %100 : vector<16x2xf32>
      %cst_78 = arith.constant dense<0.000000e+00> : vector<2xf32>
      %103 = vector.multi_reduction <add>, %102, %cst_78 [0] : vector<16x2xf32> to vector<2xf32>
      %104 = vector.shape_cast %103 : vector<2xf32> to vector<1x2xf32>
      %105 = math.sqrt %104 : vector<1x2xf32>
      %106 = vector.shape_cast %105 : vector<1x2xf32> to vector<1x1x2xf32>
      %cst_79 = arith.constant dense<0.000000e+00> : vector<1xf32>
      %107 = vector.multi_reduction <add>, %106, %cst_79 [1, 2] : vector<1x1x2xf32> to vector<1xf32>
      %108 = vector.shape_cast %107 : vector<1xf32> to vector<1x1x1xf32>
      %109 = vector.extract %108[0, 0, 0] : f32 from vector<1x1x1xf32>
      %110 = arith.mulf %109, %6 : f32
      %111 = arith.subf %99, %arg9 : vector<16x2xf32>
      %112 = arith.mulf %111, %111 : vector<16x2xf32>
      %cst_80 = arith.constant dense<0.000000e+00> : vector<2xf32>
      %113 = vector.multi_reduction <add>, %112, %cst_80 [0] : vector<16x2xf32> to vector<2xf32>
      %114 = vector.shape_cast %113 : vector<2xf32> to vector<1x2xf32>
      %115 = math.sqrt %114 : vector<1x2xf32>
      %116 = vector.shape_cast %115 : vector<1x2xf32> to vector<1x1x2xf32>
      %cst_81 = arith.constant dense<0.000000e+00> : vector<1xf32>
      %117 = vector.multi_reduction <add>, %116, %cst_81 [1, 2] : vector<1x1x2xf32> to vector<1xf32>
      %118 = vector.shape_cast %117 : vector<1xf32> to vector<1x1x1xf32>
      %119 = vector.extract %118[0, 0, 0] : f32 from vector<1x1x1xf32>
      %120 = arith.mulf %119, %6 : f32
      %cst_82 = arith.constant 1.000000e+00 : f32
      %121 = arith.mulf %cst_82, %120 : f32
      %122 = arith.mulf %94, %94 : vector<16x2xf32>
      %cst_83 = arith.constant dense<0.000000e+00> : vector<2xf32>
      %123 = vector.multi_reduction <add>, %122, %cst_83 [0] : vector<16x2xf32> to vector<2xf32>
      %124 = vector.shape_cast %123 : vector<2xf32> to vector<1x2xf32>
      %125 = math.sqrt %124 : vector<1x2xf32>
      %126 = vector.shape_cast %125 : vector<1x2xf32> to vector<1x1x2xf32>
      %cst_84 = arith.constant dense<0.000000e+00> : vector<1xf32>
      %127 = vector.multi_reduction <add>, %126, %cst_84 [1, 2] : vector<1x1x2xf32> to vector<1xf32>
      %128 = vector.shape_cast %127 : vector<1xf32> to vector<1x1x1xf32>
      %129 = vector.extract %128[0, 0, 0] : f32 from vector<1x1x1xf32>
      %130 = arith.mulf %129, %6 : f32
      %131 = arith.mulf %99, %99 : vector<16x2xf32>
      %cst_85 = arith.constant dense<0.000000e+00> : vector<2xf32>
      %132 = vector.multi_reduction <add>, %131, %cst_85 [0] : vector<16x2xf32> to vector<2xf32>
      %133 = vector.shape_cast %132 : vector<2xf32> to vector<1x2xf32>
      %134 = math.sqrt %133 : vector<1x2xf32>
      %135 = vector.shape_cast %134 : vector<1x2xf32> to vector<1x1x2xf32>
      %cst_86 = arith.constant dense<0.000000e+00> : vector<1xf32>
      %136 = vector.multi_reduction <add>, %135, %cst_86 [1, 2] : vector<1x1x2xf32> to vector<1xf32>
      %137 = vector.shape_cast %136 : vector<1xf32> to vector<1x1x1xf32>
      %138 = vector.extract %137[0, 0, 0] : f32 from vector<1x1x1xf32>
      %139 = arith.mulf %138, %6 : f32
      %140 = arith.mulf %9, %9 : vector<16x2xf32>
      %cst_87 = arith.constant dense<0.000000e+00> : vector<2xf32>
      %141 = vector.multi_reduction <add>, %140, %cst_87 [0] : vector<16x2xf32> to vector<2xf32>
      %142 = vector.shape_cast %141 : vector<2xf32> to vector<1x2xf32>
      %143 = math.sqrt %142 : vector<1x2xf32>
      %144 = vector.shape_cast %143 : vector<1x2xf32> to vector<1x1x2xf32>
      %cst_88 = arith.constant dense<0.000000e+00> : vector<1xf32>
      %145 = vector.multi_reduction <add>, %144, %cst_88 [1, 2] : vector<1x1x2xf32> to vector<1xf32>
      %146 = vector.shape_cast %145 : vector<1xf32> to vector<1x1x1xf32>
      %147 = vector.extract %146[0, 0, 0] : f32 from vector<1x1x1xf32>
      %148 = arith.mulf %147, %6 : f32
      %149 = arith.maximumf %130, %139 : f32
      %cst_89 = arith.constant 1.000000e-03 : f32
      %150 = arith.mulf %cst_89, %149 : f32
      %cst_90 = arith.constant 4.000000e-03 : f32
      %151 = arith.addf %cst_90, %150 : f32
      %cst_91 = arith.constant 1.000000e-03 : f32
      %152 = arith.mulf %cst_91, %148 : f32
      %cst_92 = arith.constant 4.000000e-03 : f32
      %153 = arith.addf %cst_92, %152 : f32
      %154 = arith.cmpf olt, %110, %151 : f32
      %155 = arith.cmpf olt, %121, %153 : f32
      %156 = arith.andi %154, %155 : i1
      %157 = arith.extui %156 : i1 to i32
      %c1_i32_93 = arith.constant 1 : i32
      %158 = arith.addi %arg7, %c1_i32_93 : i32
      scf.yield %158, %94, %99, %101, %157 : i32, vector<16x2xf32>, vector<16x2xf32>, vector<16x2xf32>, i32
    }
    %c0 = arith.constant 0 : index
    %c0_4 = arith.constant 0 : index
    %8 = vector.load %arg5[%c0, %c0_4] : memref<16x2xf32, #tpu.memory_space<vmem>>, vector<16x2xf32>
    tpu.vector_store %arg5[%c0, %c0_4], %7#1 {strides = array<i32>} : memref<16x2xf32, #tpu.memory_space<vmem>>, vector<16x2xf32>,
    return
  }
  func.func @transform_0(%arg0: i32) -> (i32, i32, i32) {
    %c0_i32 = arith.constant 0 : i32
    %c0_i32_0 = arith.constant 0 : i32
    %c0_i32_1 = arith.constant 0 : i32
    return %c0_i32, %c0_i32_0, %arg0 : i32, i32, i32
  }
  func.func @transform_1(%arg0: i32) -> (i32, i32) {
    %c0_i32 = arith.constant 0 : i32
    %c0_i32_0 = arith.constant 0 : i32
    return %c0_i32, %arg0 : i32, i32
  }
  func.func @transform_2(%arg0: i32) -> (i32, i32) {
    %c0_i32 = arith.constant 0 : i32
    %c0_i32_0 = arith.constant 0 : i32
    return %c0_i32, %arg0 : i32, i32
  }
  func.func @transform_3(%arg0: i32) -> (i32, i32) {
    %c0_i32 = arith.constant 0 : i32
    %c0_i32_0 = arith.constant 0 : i32
    return %c0_i32, %arg0 : i32, i32
  }
  func.func @transform_4(%arg0: i32) -> (i32, i32) {
    %c0_i32 = arith.constant 0 : i32
    %c0_i32_0 = arith.constant 0 : i32
    return %c0_i32, %arg0 : i32, i32
  }
}

module attributes {stable_mosaic.version = 11 : i64} {
  func.func @_admm_kernel(%arg0: i32, %arg1: memref<16x16x2xf32, #tpu.memory_space<vmem>>, %arg2: memref<16x2xf32, #tpu.memory_space<vmem>>, %arg3: memref<16x2xf32, #tpu.memory_space<vmem>>, %arg4: memref<16x2xf32, #tpu.memory_space<vmem>>, %arg5: memref<16x2xf32, #tpu.memory_space<vmem>>) attributes {dimension_semantics = [#tpu.dimension_semantics<parallel>], iteration_bounds = array<i64: 1>, scalar_prefetch = 0 : i64, scratch_operands = 0 : i64, tpu.core_type = #tpu.core_type<tc>, window_params = [{pipeline_mode = #tpu.pipeline_mode<synchronous>, transform_indices = @transform_0, window_bounds = array<i64: 16, 16, 2>}, {transform_indices = @transform_1, window_bounds = array<i64: 16, 2>}, {transform_indices = @transform_2, window_bounds = array<i64: 16, 2>}, {transform_indices = @transform_3, window_bounds = array<i64: 16, 2>}, {transform_indices = @transform_4, window_bounds = array<i64: 16, 2>}]} {
    %cst = arith.constant 0.000000e+00 : f32
    %0 = vector.broadcast %cst : f32 to vector<16x2xf32>
    %c2_i32 = arith.constant 2 : i32
    %1 = arith.muli %arg0, %c2_i32 : i32
    %c2_i32_0 = arith.constant 2 : i32
    %2 = arith.subi %c2_i32_0, %1 : i32
    %c1_i32 = arith.constant 1 : i32
    %c2_i32_1 = arith.constant 2 : i32
    %3 = arith.maxsi %c1_i32, %2 : i32
    %4 = arith.minsi %c2_i32_1, %3 : i32
    %5 = arith.sitofp %4 : i32 to f32
    %cst_2 = arith.constant 1.000000e+00 : f32
    %6 = arith.divf %cst_2, %5 : f32
    %c0_i32 = arith.constant 0 : i32
    %c0_i32_3 = arith.constant 0 : i32
    %7:5 = scf.while (%arg6 = %c0_i32, %arg7 = %0, %arg8 = %0, %arg9 = %0, %arg10 = %c0_i32_3) : (i32, vector<16x2xf32>, vector<16x2xf32>, vector<16x2xf32>, i32) -> (i32, vector<16x2xf32>, vector<16x2xf32>, vector<16x2xf32>, i32) {
      %c200_i32 = arith.constant 200 : i32
      %9 = arith.cmpi slt, %arg6, %c200_i32 : i32
      %c0_i32_5 = arith.constant 0 : i32
      %10 = arith.cmpi eq, %arg10, %c0_i32_5 : i32
      %11 = arith.andi %9, %10 : i1
      scf.condition(%11) %arg6, %arg7, %arg8, %arg9, %arg10 : i32, vector<16x2xf32>, vector<16x2xf32>, vector<16x2xf32>, i32
    } do {
    ^bb0(%arg6: i32, %arg7: vector<16x2xf32>, %arg8: vector<16x2xf32>, %arg9: vector<16x2xf32>, %arg10: i32):
      %9 = arith.subf %arg8, %arg9 : vector<16x2xf32>
      %c0_5 = arith.constant 0 : index
      %c0_6 = arith.constant 0 : index
      %10 = vector.load %arg2[%c0_5, %c0_6] : memref<16x2xf32, #tpu.memory_space<vmem>>, vector<16x2xf32>
      %c0_7 = arith.constant 0 : index
      %c0_8 = arith.constant 0 : index
      %c0_9 = arith.constant 0 : index
      %11 = vector.load %arg1[%c0_7, %c0_8, %c0_9] : memref<16x16x2xf32, #tpu.memory_space<vmem>>, vector<1x16x2xf32>
      %12 = vector.shape_cast %11 : vector<1x16x2xf32> to vector<16x2xf32>
      %13 = vector.extract_strided_slice %9 {offsets = [0, 0], sizes = [1, 2], strides = [1, 1]} : vector<16x2xf32> to vector<1x2xf32>
      %14 = vector.broadcast %13 : vector<1x2xf32> to vector<16x2xf32>
      %15 = arith.mulf %12, %14 : vector<16x2xf32>
      %16 = arith.addf %10, %15 : vector<16x2xf32>
      %c1 = arith.constant 1 : index
      %c0_10 = arith.constant 0 : index
      %c0_11 = arith.constant 0 : index
      %17 = vector.load %arg1[%c1, %c0_10, %c0_11] : memref<16x16x2xf32, #tpu.memory_space<vmem>>, vector<1x16x2xf32>
      %18 = vector.shape_cast %17 : vector<1x16x2xf32> to vector<16x2xf32>
      %19 = vector.extract_strided_slice %9 {offsets = [1, 0], sizes = [1, 2], strides = [1, 1]} : vector<16x2xf32> to vector<1x2xf32>
      %20 = vector.broadcast %19 : vector<1x2xf32> to vector<16x2xf32>
      %21 = arith.mulf %18, %20 : vector<16x2xf32>
      %22 = arith.addf %0, %21 : vector<16x2xf32>
      %c2 = arith.constant 2 : index
      %c0_12 = arith.constant 0 : index
      %c0_13 = arith.constant 0 : index
      %23 = vector.load %arg1[%c2, %c0_12, %c0_13] : memref<16x16x2xf32, #tpu.memory_space<vmem>>, vector<1x16x2xf32>
      %24 = vector.shape_cast %23 : vector<1x16x2xf32> to vector<16x2xf32>
      %25 = vector.extract_strided_slice %9 {offsets = [2, 0], sizes = [1, 2], strides = [1, 1]} : vector<16x2xf32> to vector<1x2xf32>
      %26 = vector.broadcast %25 : vector<1x2xf32> to vector<16x2xf32>
      %27 = arith.mulf %24, %26 : vector<16x2xf32>
      %28 = arith.addf %0, %27 : vector<16x2xf32>
      %c3 = arith.constant 3 : index
      %c0_14 = arith.constant 0 : index
      %c0_15 = arith.constant 0 : index
      %29 = vector.load %arg1[%c3, %c0_14, %c0_15] : memref<16x16x2xf32, #tpu.memory_space<vmem>>, vector<1x16x2xf32>
      %30 = vector.shape_cast %29 : vector<1x16x2xf32> to vector<16x2xf32>
      %31 = vector.extract_strided_slice %9 {offsets = [3, 0], sizes = [1, 2], strides = [1, 1]} : vector<16x2xf32> to vector<1x2xf32>
      %32 = vector.broadcast %31 : vector<1x2xf32> to vector<16x2xf32>
      %33 = arith.mulf %30, %32 : vector<16x2xf32>
      %34 = arith.addf %0, %33 : vector<16x2xf32>
      %c4 = arith.constant 4 : index
      %c0_16 = arith.constant 0 : index
      %c0_17 = arith.constant 0 : index
      %35 = vector.load %arg1[%c4, %c0_16, %c0_17] : memref<16x16x2xf32, #tpu.memory_space<vmem>>, vector<1x16x2xf32>
      %36 = vector.shape_cast %35 : vector<1x16x2xf32> to vector<16x2xf32>
      %37 = vector.extract_strided_slice %9 {offsets = [4, 0], sizes = [1, 2], strides = [1, 1]} : vector<16x2xf32> to vector<1x2xf32>
      %38 = vector.broadcast %37 : vector<1x2xf32> to vector<16x2xf32>
      %39 = arith.mulf %36, %38 : vector<16x2xf32>
      %40 = arith.addf %16, %39 : vector<16x2xf32>
      %c5 = arith.constant 5 : index
      %c0_18 = arith.constant 0 : index
      %c0_19 = arith.constant 0 : index
      %41 = vector.load %arg1[%c5, %c0_18, %c0_19] : memref<16x16x2xf32, #tpu.memory_space<vmem>>, vector<1x16x2xf32>
      %42 = vector.shape_cast %41 : vector<1x16x2xf32> to vector<16x2xf32>
      %43 = vector.extract_strided_slice %9 {offsets = [5, 0], sizes = [1, 2], strides = [1, 1]} : vector<16x2xf32> to vector<1x2xf32>
      %44 = vector.broadcast %43 : vector<1x2xf32> to vector<16x2xf32>
      %45 = arith.mulf %42, %44 : vector<16x2xf32>
      %46 = arith.addf %22, %45 : vector<16x2xf32>
      %c6 = arith.constant 6 : index
      %c0_20 = arith.constant 0 : index
      %c0_21 = arith.constant 0 : index
      %47 = vector.load %arg1[%c6, %c0_20, %c0_21] : memref<16x16x2xf32, #tpu.memory_space<vmem>>, vector<1x16x2xf32>
      %48 = vector.shape_cast %47 : vector<1x16x2xf32> to vector<16x2xf32>
      %49 = vector.extract_strided_slice %9 {offsets = [6, 0], sizes = [1, 2], strides = [1, 1]} : vector<16x2xf32> to vector<1x2xf32>
      %50 = vector.broadcast %49 : vector<1x2xf32> to vector<16x2xf32>
      %51 = arith.mulf %48, %50 : vector<16x2xf32>
      %52 = arith.addf %28, %51 : vector<16x2xf32>
      %c7 = arith.constant 7 : index
      %c0_22 = arith.constant 0 : index
      %c0_23 = arith.constant 0 : index
      %53 = vector.load %arg1[%c7, %c0_22, %c0_23] : memref<16x16x2xf32, #tpu.memory_space<vmem>>, vector<1x16x2xf32>
      %54 = vector.shape_cast %53 : vector<1x16x2xf32> to vector<16x2xf32>
      %55 = vector.extract_strided_slice %9 {offsets = [7, 0], sizes = [1, 2], strides = [1, 1]} : vector<16x2xf32> to vector<1x2xf32>
      %56 = vector.broadcast %55 : vector<1x2xf32> to vector<16x2xf32>
      %57 = arith.mulf %54, %56 : vector<16x2xf32>
      %58 = arith.addf %34, %57 : vector<16x2xf32>
      %c8 = arith.constant 8 : index
      %c0_24 = arith.constant 0 : index
      %c0_25 = arith.constant 0 : index
      %59 = vector.load %arg1[%c8, %c0_24, %c0_25] : memref<16x16x2xf32, #tpu.memory_space<vmem>>, vector<1x16x2xf32>
      %60 = vector.shape_cast %59 : vector<1x16x2xf32> to vector<16x2xf32>
      %61 = vector.extract_strided_slice %9 {offsets = [8, 0], sizes = [1, 2], strides = [1, 1]} : vector<16x2xf32> to vector<1x2xf32>
      %62 = vector.broadcast %61 : vector<1x2xf32> to vector<16x2xf32>
      %63 = arith.mulf %60, %62 : vector<16x2xf32>
      %64 = arith.addf %40, %63 : vector<16x2xf32>
      %c9 = arith.constant 9 : index
      %c0_26 = arith.constant 0 : index
      %c0_27 = arith.constant 0 : index
      %65 = vector.load %arg1[%c9, %c0_26, %c0_27] : memref<16x16x2xf32, #tpu.memory_space<vmem>>, vector<1x16x2xf32>
      %66 = vector.shape_cast %65 : vector<1x16x2xf32> to vector<16x2xf32>
      %67 = vector.extract_strided_slice %9 {offsets = [9, 0], sizes = [1, 2], strides = [1, 1]} : vector<16x2xf32> to vector<1x2xf32>
      %68 = vector.broadcast %67 : vector<1x2xf32> to vector<16x2xf32>
      %69 = arith.mulf %66, %68 : vector<16x2xf32>
      %70 = arith.addf %46, %69 : vector<16x2xf32>
      %c10 = arith.constant 10 : index
      %c0_28 = arith.constant 0 : index
      %c0_29 = arith.constant 0 : index
      %71 = vector.load %arg1[%c10, %c0_28, %c0_29] : memref<16x16x2xf32, #tpu.memory_space<vmem>>, vector<1x16x2xf32>
      %72 = vector.shape_cast %71 : vector<1x16x2xf32> to vector<16x2xf32>
      %73 = vector.extract_strided_slice %9 {offsets = [10, 0], sizes = [1, 2], strides = [1, 1]} : vector<16x2xf32> to vector<1x2xf32>
      %74 = vector.broadcast %73 : vector<1x2xf32> to vector<16x2xf32>
      %75 = arith.mulf %72, %74 : vector<16x2xf32>
      %76 = arith.addf %52, %75 : vector<16x2xf32>
      %c11 = arith.constant 11 : index
      %c0_30 = arith.constant 0 : index
      %c0_31 = arith.constant 0 : index
      %77 = vector.load %arg1[%c11, %c0_30, %c0_31] : memref<16x16x2xf32, #tpu.memory_space<vmem>>, vector<1x16x2xf32>
      %78 = vector.shape_cast %77 : vector<1x16x2xf32> to vector<16x2xf32>
      %79 = vector.extract_strided_slice %9 {offsets = [11, 0], sizes = [1, 2], strides = [1, 1]} : vector<16x2xf32> to vector<1x2xf32>
      %80 = vector.broadcast %79 : vector<1x2xf32> to vector<16x2xf32>
      %81 = arith.mulf %78, %80 : vector<16x2xf32>
      %82 = arith.addf %58, %81 : vector<16x2xf32>
      %c12 = arith.constant 12 : index
      %c0_32 = arith.constant 0 : index
      %c0_33 = arith.constant 0 : index
      %83 = vector.load %arg1[%c12, %c0_32, %c0_33] : memref<16x16x2xf32, #tpu.memory_space<vmem>>, vector<1x16x2xf32>
      %84 = vector.shape_cast %83 : vector<1x16x2xf32> to vector<16x2xf32>
      %85 = vector.extract_strided_slice %9 {offsets = [12, 0], sizes = [1, 2], strides = [1, 1]} : vector<16x2xf32> to vector<1x2xf32>
      %86 = vector.broadcast %85 : vector<1x2xf32> to vector<16x2xf32>
      %87 = arith.mulf %84, %86 : vector<16x2xf32>
      %88 = arith.addf %64, %87 : vector<16x2xf32>
      %c13 = arith.constant 13 : index
      %c0_34 = arith.constant 0 : index
      %c0_35 = arith.constant 0 : index
      %89 = vector.load %arg1[%c13, %c0_34, %c0_35] : memref<16x16x2xf32, #tpu.memory_space<vmem>>, vector<1x16x2xf32>
      %90 = vector.shape_cast %89 : vector<1x16x2xf32> to vector<16x2xf32>
      %91 = vector.extract_strided_slice %9 {offsets = [13, 0], sizes = [1, 2], strides = [1, 1]} : vector<16x2xf32> to vector<1x2xf32>
      %92 = vector.broadcast %91 : vector<1x2xf32> to vector<16x2xf32>
      %93 = arith.mulf %90, %92 : vector<16x2xf32>
      %94 = arith.addf %70, %93 : vector<16x2xf32>
      %c14 = arith.constant 14 : index
      %c0_36 = arith.constant 0 : index
      %c0_37 = arith.constant 0 : index
      %95 = vector.load %arg1[%c14, %c0_36, %c0_37] : memref<16x16x2xf32, #tpu.memory_space<vmem>>, vector<1x16x2xf32>
      %96 = vector.shape_cast %95 : vector<1x16x2xf32> to vector<16x2xf32>
      %97 = vector.extract_strided_slice %9 {offsets = [14, 0], sizes = [1, 2], strides = [1, 1]} : vector<16x2xf32> to vector<1x2xf32>
      %98 = vector.broadcast %97 : vector<1x2xf32> to vector<16x2xf32>
      %99 = arith.mulf %96, %98 : vector<16x2xf32>
      %100 = arith.addf %76, %99 : vector<16x2xf32>
      %c15 = arith.constant 15 : index
      %c0_38 = arith.constant 0 : index
      %c0_39 = arith.constant 0 : index
      %101 = vector.load %arg1[%c15, %c0_38, %c0_39] : memref<16x16x2xf32, #tpu.memory_space<vmem>>, vector<1x16x2xf32>
      %102 = vector.shape_cast %101 : vector<1x16x2xf32> to vector<16x2xf32>
      %103 = vector.extract_strided_slice %9 {offsets = [15, 0], sizes = [1, 2], strides = [1, 1]} : vector<16x2xf32> to vector<1x2xf32>
      %104 = vector.broadcast %103 : vector<1x2xf32> to vector<16x2xf32>
      %105 = arith.mulf %102, %104 : vector<16x2xf32>
      %106 = arith.addf %82, %105 : vector<16x2xf32>
      %107 = arith.addf %88, %94 : vector<16x2xf32>
      %108 = arith.addf %107, %100 : vector<16x2xf32>
      %109 = arith.addf %108, %106 : vector<16x2xf32>
      %110 = arith.addf %109, %arg9 : vector<16x2xf32>
      %c0_40 = arith.constant 0 : index
      %c0_41 = arith.constant 0 : index
      %111 = vector.load %arg3[%c0_40, %c0_41] : memref<16x2xf32, #tpu.memory_space<vmem>>, vector<16x2xf32>
      %112 = arith.maximumf %110, %111 : vector<16x2xf32>
      %c0_42 = arith.constant 0 : index
      %c0_43 = arith.constant 0 : index
      %113 = vector.load %arg4[%c0_42, %c0_43] : memref<16x2xf32, #tpu.memory_space<vmem>>, vector<16x2xf32>
      %114 = arith.minimumf %112, %113 : vector<16x2xf32>
      %115 = arith.subf %109, %114 : vector<16x2xf32>
      %116 = arith.addf %arg9, %115 : vector<16x2xf32>
      %117 = arith.mulf %115, %115 : vector<16x2xf32>
      %cst_44 = arith.constant dense<0.000000e+00> : vector<2xf32>
      %118 = vector.multi_reduction <add>, %117, %cst_44 [0] : vector<16x2xf32> to vector<2xf32>
      %119 = vector.shape_cast %118 : vector<2xf32> to vector<1x2xf32>
      %120 = math.sqrt %119 : vector<1x2xf32>
      %121 = vector.shape_cast %120 : vector<1x2xf32> to vector<1x1x2xf32>
      %cst_45 = arith.constant dense<0.000000e+00> : vector<1xf32>
      %122 = vector.multi_reduction <add>, %121, %cst_45 [1, 2] : vector<1x1x2xf32> to vector<1xf32>
      %123 = vector.shape_cast %122 : vector<1xf32> to vector<1x1x1xf32>
      %124 = vector.extract %123[0, 0, 0] : f32 from vector<1x1x1xf32>
      %125 = arith.mulf %124, %6 : f32
      %126 = arith.subf %114, %arg8 : vector<16x2xf32>
      %127 = arith.mulf %126, %126 : vector<16x2xf32>
      %cst_46 = arith.constant dense<0.000000e+00> : vector<2xf32>
      %128 = vector.multi_reduction <add>, %127, %cst_46 [0] : vector<16x2xf32> to vector<2xf32>
      %129 = vector.shape_cast %128 : vector<2xf32> to vector<1x2xf32>
      %130 = math.sqrt %129 : vector<1x2xf32>
      %131 = vector.shape_cast %130 : vector<1x2xf32> to vector<1x1x2xf32>
      %cst_47 = arith.constant dense<0.000000e+00> : vector<1xf32>
      %132 = vector.multi_reduction <add>, %131, %cst_47 [1, 2] : vector<1x1x2xf32> to vector<1xf32>
      %133 = vector.shape_cast %132 : vector<1xf32> to vector<1x1x1xf32>
      %134 = vector.extract %133[0, 0, 0] : f32 from vector<1x1x1xf32>
      %135 = arith.mulf %134, %6 : f32
      %cst_48 = arith.constant 1.000000e+00 : f32
      %136 = arith.mulf %cst_48, %135 : f32
      %137 = arith.mulf %109, %109 : vector<16x2xf32>
      %cst_49 = arith.constant dense<0.000000e+00> : vector<2xf32>
      %138 = vector.multi_reduction <add>, %137, %cst_49 [0] : vector<16x2xf32> to vector<2xf32>
      %139 = vector.shape_cast %138 : vector<2xf32> to vector<1x2xf32>
      %140 = math.sqrt %139 : vector<1x2xf32>
      %141 = vector.shape_cast %140 : vector<1x2xf32> to vector<1x1x2xf32>
      %cst_50 = arith.constant dense<0.000000e+00> : vector<1xf32>
      %142 = vector.multi_reduction <add>, %141, %cst_50 [1, 2] : vector<1x1x2xf32> to vector<1xf32>
      %143 = vector.shape_cast %142 : vector<1xf32> to vector<1x1x1xf32>
      %144 = vector.extract %143[0, 0, 0] : f32 from vector<1x1x1xf32>
      %145 = arith.mulf %144, %6 : f32
      %146 = arith.mulf %114, %114 : vector<16x2xf32>
      %cst_51 = arith.constant dense<0.000000e+00> : vector<2xf32>
      %147 = vector.multi_reduction <add>, %146, %cst_51 [0] : vector<16x2xf32> to vector<2xf32>
      %148 = vector.shape_cast %147 : vector<2xf32> to vector<1x2xf32>
      %149 = math.sqrt %148 : vector<1x2xf32>
      %150 = vector.shape_cast %149 : vector<1x2xf32> to vector<1x1x2xf32>
      %cst_52 = arith.constant dense<0.000000e+00> : vector<1xf32>
      %151 = vector.multi_reduction <add>, %150, %cst_52 [1, 2] : vector<1x1x2xf32> to vector<1xf32>
      %152 = vector.shape_cast %151 : vector<1xf32> to vector<1x1x1xf32>
      %153 = vector.extract %152[0, 0, 0] : f32 from vector<1x1x1xf32>
      %154 = arith.mulf %153, %6 : f32
      %155 = arith.mulf %9, %9 : vector<16x2xf32>
      %cst_53 = arith.constant dense<0.000000e+00> : vector<2xf32>
      %156 = vector.multi_reduction <add>, %155, %cst_53 [0] : vector<16x2xf32> to vector<2xf32>
      %157 = vector.shape_cast %156 : vector<2xf32> to vector<1x2xf32>
      %158 = math.sqrt %157 : vector<1x2xf32>
      %159 = vector.shape_cast %158 : vector<1x2xf32> to vector<1x1x2xf32>
      %cst_54 = arith.constant dense<0.000000e+00> : vector<1xf32>
      %160 = vector.multi_reduction <add>, %159, %cst_54 [1, 2] : vector<1x1x2xf32> to vector<1xf32>
      %161 = vector.shape_cast %160 : vector<1xf32> to vector<1x1x1xf32>
      %162 = vector.extract %161[0, 0, 0] : f32 from vector<1x1x1xf32>
      %163 = arith.mulf %162, %6 : f32
      %164 = arith.maximumf %145, %154 : f32
      %cst_55 = arith.constant 1.000000e-03 : f32
      %165 = arith.mulf %cst_55, %164 : f32
      %cst_56 = arith.constant 4.000000e-03 : f32
      %166 = arith.addf %cst_56, %165 : f32
      %cst_57 = arith.constant 1.000000e-03 : f32
      %167 = arith.mulf %cst_57, %163 : f32
      %cst_58 = arith.constant 4.000000e-03 : f32
      %168 = arith.addf %cst_58, %167 : f32
      %169 = arith.cmpf olt, %125, %166 : f32
      %170 = arith.cmpf olt, %136, %168 : f32
      %171 = arith.andi %169, %170 : i1
      %172 = arith.extui %171 : i1 to i32
      %c1_i32_59 = arith.constant 1 : i32
      %173 = arith.addi %arg6, %c1_i32_59 : i32
      scf.yield %173, %109, %114, %116, %172 : i32, vector<16x2xf32>, vector<16x2xf32>, vector<16x2xf32>, i32
    }
    %c0 = arith.constant 0 : index
    %c0_4 = arith.constant 0 : index
    %8 = vector.load %arg5[%c0, %c0_4] : memref<16x2xf32, #tpu.memory_space<vmem>>, vector<16x2xf32>
    tpu.vector_store %arg5[%c0, %c0_4], %7#1 {strides = array<i32>} : memref<16x2xf32, #tpu.memory_space<vmem>>, vector<16x2xf32>,
    return
  }
  func.func @transform_0(%arg0: i32) -> (i32, i32, i32) {
    %c0_i32 = arith.constant 0 : i32
    %c0_i32_0 = arith.constant 0 : i32
    %c0_i32_1 = arith.constant 0 : i32
    return %c0_i32, %c0_i32_0, %arg0 : i32, i32, i32
  }
  func.func @transform_1(%arg0: i32) -> (i32, i32) {
    %c0_i32 = arith.constant 0 : i32
    %c0_i32_0 = arith.constant 0 : i32
    return %c0_i32, %arg0 : i32, i32
  }
  func.func @transform_2(%arg0: i32) -> (i32, i32) {
    %c0_i32 = arith.constant 0 : i32
    %c0_i32_0 = arith.constant 0 : i32
    return %c0_i32, %arg0 : i32, i32
  }
  func.func @transform_3(%arg0: i32) -> (i32, i32) {
    %c0_i32 = arith.constant 0 : i32
    %c0_i32_0 = arith.constant 0 : i32
    return %c0_i32, %arg0 : i32, i32
  }
  func.func @transform_4(%arg0: i32) -> (i32, i32) {
    %c0_i32 = arith.constant 0 : i32
    %c0_i32_0 = arith.constant 0 : i32
    return %c0_i32, %arg0 : i32, i32
  }
}

module attributes {stable_mosaic.version = 11 : i64} {
  func.func @_admm_kernel(%arg0: i32, %arg1: memref<16x16x2xf32, #tpu.memory_space<vmem>>, %arg2: memref<16x2xf32, #tpu.memory_space<vmem>>, %arg3: memref<16x2xf32, #tpu.memory_space<vmem>>, %arg4: memref<16x2xf32, #tpu.memory_space<vmem>>, %arg5: memref<16x2xf32, #tpu.memory_space<vmem>>) attributes {dimension_semantics = [#tpu.dimension_semantics<parallel>], iteration_bounds = array<i64: 1>, scalar_prefetch = 0 : i64, scratch_operands = 0 : i64, tpu.core_type = #tpu.core_type<tc>, window_params = [{transform_indices = @transform_0, window_bounds = array<i64: 16, 16, 2>}, {transform_indices = @transform_1, window_bounds = array<i64: 16, 2>}, {transform_indices = @transform_2, window_bounds = array<i64: 16, 2>}, {transform_indices = @transform_3, window_bounds = array<i64: 16, 2>}, {transform_indices = @transform_4, window_bounds = array<i64: 16, 2>}]} {
    %cst = arith.constant 0.000000e+00 : f32
    %0 = vector.broadcast %cst : f32 to vector<16x2xf32>
    %c2_i32 = arith.constant 2 : i32
    %1 = arith.muli %arg0, %c2_i32 : i32
    %c2_i32_0 = arith.constant 2 : i32
    %2 = arith.subi %c2_i32_0, %1 : i32
    %c1_i32 = arith.constant 1 : i32
    %c2_i32_1 = arith.constant 2 : i32
    %3 = arith.maxsi %c1_i32, %2 : i32
    %4 = arith.minsi %c2_i32_1, %3 : i32
    %5 = arith.sitofp %4 : i32 to f32
    %cst_2 = arith.constant 1.000000e+00 : f32
    %6 = arith.divf %cst_2, %5 : f32
    %c0_i32 = arith.constant 0 : i32
    %c0_i32_3 = arith.constant 0 : i32
    %7:5 = scf.while (%arg6 = %c0_i32, %arg7 = %0, %arg8 = %0, %arg9 = %0, %arg10 = %c0_i32_3) : (i32, vector<16x2xf32>, vector<16x2xf32>, vector<16x2xf32>, i32) -> (i32, vector<16x2xf32>, vector<16x2xf32>, vector<16x2xf32>, i32) {
      %c200_i32 = arith.constant 200 : i32
      %9 = arith.cmpi slt, %arg6, %c200_i32 : i32
      %c0_i32_5 = arith.constant 0 : i32
      %10 = arith.cmpi eq, %arg10, %c0_i32_5 : i32
      %11 = arith.andi %9, %10 : i1
      scf.condition(%11) %arg6, %arg7, %arg8, %arg9, %arg10 : i32, vector<16x2xf32>, vector<16x2xf32>, vector<16x2xf32>, i32
    } do {
    ^bb0(%arg6: i32, %arg7: vector<16x2xf32>, %arg8: vector<16x2xf32>, %arg9: vector<16x2xf32>, %arg10: i32):
      %9 = arith.subf %arg8, %arg9 : vector<16x2xf32>
      %c0_5 = arith.constant 0 : index
      %c0_6 = arith.constant 0 : index
      %10 = vector.load %arg2[%c0_5, %c0_6] : memref<16x2xf32, #tpu.memory_space<vmem>>, vector<16x2xf32>
      %c0_7 = arith.constant 0 : index
      %c0_8 = arith.constant 0 : index
      %c0_9 = arith.constant 0 : index
      %11 = vector.load %arg1[%c0_7, %c0_8, %c0_9] : memref<16x16x2xf32, #tpu.memory_space<vmem>>, vector<1x16x2xf32>
      %12 = vector.shape_cast %11 : vector<1x16x2xf32> to vector<16x2xf32>
      %13 = vector.extract_strided_slice %9 {offsets = [0, 0], sizes = [1, 2], strides = [1, 1]} : vector<16x2xf32> to vector<1x2xf32>
      %14 = vector.broadcast %13 : vector<1x2xf32> to vector<16x2xf32>
      %15 = arith.mulf %12, %14 : vector<16x2xf32>
      %16 = arith.addf %10, %15 : vector<16x2xf32>
      %c1 = arith.constant 1 : index
      %c0_10 = arith.constant 0 : index
      %c0_11 = arith.constant 0 : index
      %17 = vector.load %arg1[%c1, %c0_10, %c0_11] : memref<16x16x2xf32, #tpu.memory_space<vmem>>, vector<1x16x2xf32>
      %18 = vector.shape_cast %17 : vector<1x16x2xf32> to vector<16x2xf32>
      %19 = vector.extract_strided_slice %9 {offsets = [1, 0], sizes = [1, 2], strides = [1, 1]} : vector<16x2xf32> to vector<1x2xf32>
      %20 = vector.broadcast %19 : vector<1x2xf32> to vector<16x2xf32>
      %21 = arith.mulf %18, %20 : vector<16x2xf32>
      %22 = arith.addf %0, %21 : vector<16x2xf32>
      %c2 = arith.constant 2 : index
      %c0_12 = arith.constant 0 : index
      %c0_13 = arith.constant 0 : index
      %23 = vector.load %arg1[%c2, %c0_12, %c0_13] : memref<16x16x2xf32, #tpu.memory_space<vmem>>, vector<1x16x2xf32>
      %24 = vector.shape_cast %23 : vector<1x16x2xf32> to vector<16x2xf32>
      %25 = vector.extract_strided_slice %9 {offsets = [2, 0], sizes = [1, 2], strides = [1, 1]} : vector<16x2xf32> to vector<1x2xf32>
      %26 = vector.broadcast %25 : vector<1x2xf32> to vector<16x2xf32>
      %27 = arith.mulf %24, %26 : vector<16x2xf32>
      %28 = arith.addf %0, %27 : vector<16x2xf32>
      %c3 = arith.constant 3 : index
      %c0_14 = arith.constant 0 : index
      %c0_15 = arith.constant 0 : index
      %29 = vector.load %arg1[%c3, %c0_14, %c0_15] : memref<16x16x2xf32, #tpu.memory_space<vmem>>, vector<1x16x2xf32>
      %30 = vector.shape_cast %29 : vector<1x16x2xf32> to vector<16x2xf32>
      %31 = vector.extract_strided_slice %9 {offsets = [3, 0], sizes = [1, 2], strides = [1, 1]} : vector<16x2xf32> to vector<1x2xf32>
      %32 = vector.broadcast %31 : vector<1x2xf32> to vector<16x2xf32>
      %33 = arith.mulf %30, %32 : vector<16x2xf32>
      %34 = arith.addf %0, %33 : vector<16x2xf32>
      %c4 = arith.constant 4 : index
      %c0_16 = arith.constant 0 : index
      %c0_17 = arith.constant 0 : index
      %35 = vector.load %arg1[%c4, %c0_16, %c0_17] : memref<16x16x2xf32, #tpu.memory_space<vmem>>, vector<1x16x2xf32>
      %36 = vector.shape_cast %35 : vector<1x16x2xf32> to vector<16x2xf32>
      %37 = vector.extract_strided_slice %9 {offsets = [4, 0], sizes = [1, 2], strides = [1, 1]} : vector<16x2xf32> to vector<1x2xf32>
      %38 = vector.broadcast %37 : vector<1x2xf32> to vector<16x2xf32>
      %39 = arith.mulf %36, %38 : vector<16x2xf32>
      %40 = arith.addf %16, %39 : vector<16x2xf32>
      %c5 = arith.constant 5 : index
      %c0_18 = arith.constant 0 : index
      %c0_19 = arith.constant 0 : index
      %41 = vector.load %arg1[%c5, %c0_18, %c0_19] : memref<16x16x2xf32, #tpu.memory_space<vmem>>, vector<1x16x2xf32>
      %42 = vector.shape_cast %41 : vector<1x16x2xf32> to vector<16x2xf32>
      %43 = vector.extract_strided_slice %9 {offsets = [5, 0], sizes = [1, 2], strides = [1, 1]} : vector<16x2xf32> to vector<1x2xf32>
      %44 = vector.broadcast %43 : vector<1x2xf32> to vector<16x2xf32>
      %45 = arith.mulf %42, %44 : vector<16x2xf32>
      %46 = arith.addf %22, %45 : vector<16x2xf32>
      %c6 = arith.constant 6 : index
      %c0_20 = arith.constant 0 : index
      %c0_21 = arith.constant 0 : index
      %47 = vector.load %arg1[%c6, %c0_20, %c0_21] : memref<16x16x2xf32, #tpu.memory_space<vmem>>, vector<1x16x2xf32>
      %48 = vector.shape_cast %47 : vector<1x16x2xf32> to vector<16x2xf32>
      %49 = vector.extract_strided_slice %9 {offsets = [6, 0], sizes = [1, 2], strides = [1, 1]} : vector<16x2xf32> to vector<1x2xf32>
      %50 = vector.broadcast %49 : vector<1x2xf32> to vector<16x2xf32>
      %51 = arith.mulf %48, %50 : vector<16x2xf32>
      %52 = arith.addf %28, %51 : vector<16x2xf32>
      %c7 = arith.constant 7 : index
      %c0_22 = arith.constant 0 : index
      %c0_23 = arith.constant 0 : index
      %53 = vector.load %arg1[%c7, %c0_22, %c0_23] : memref<16x16x2xf32, #tpu.memory_space<vmem>>, vector<1x16x2xf32>
      %54 = vector.shape_cast %53 : vector<1x16x2xf32> to vector<16x2xf32>
      %55 = vector.extract_strided_slice %9 {offsets = [7, 0], sizes = [1, 2], strides = [1, 1]} : vector<16x2xf32> to vector<1x2xf32>
      %56 = vector.broadcast %55 : vector<1x2xf32> to vector<16x2xf32>
      %57 = arith.mulf %54, %56 : vector<16x2xf32>
      %58 = arith.addf %34, %57 : vector<16x2xf32>
      %c8 = arith.constant 8 : index
      %c0_24 = arith.constant 0 : index
      %c0_25 = arith.constant 0 : index
      %59 = vector.load %arg1[%c8, %c0_24, %c0_25] : memref<16x16x2xf32, #tpu.memory_space<vmem>>, vector<1x16x2xf32>
      %60 = vector.shape_cast %59 : vector<1x16x2xf32> to vector<16x2xf32>
      %61 = vector.extract_strided_slice %9 {offsets = [8, 0], sizes = [1, 2], strides = [1, 1]} : vector<16x2xf32> to vector<1x2xf32>
      %62 = vector.broadcast %61 : vector<1x2xf32> to vector<16x2xf32>
      %63 = arith.mulf %60, %62 : vector<16x2xf32>
      %64 = arith.addf %40, %63 : vector<16x2xf32>
      %c9 = arith.constant 9 : index
      %c0_26 = arith.constant 0 : index
      %c0_27 = arith.constant 0 : index
      %65 = vector.load %arg1[%c9, %c0_26, %c0_27] : memref<16x16x2xf32, #tpu.memory_space<vmem>>, vector<1x16x2xf32>
      %66 = vector.shape_cast %65 : vector<1x16x2xf32> to vector<16x2xf32>
      %67 = vector.extract_strided_slice %9 {offsets = [9, 0], sizes = [1, 2], strides = [1, 1]} : vector<16x2xf32> to vector<1x2xf32>
      %68 = vector.broadcast %67 : vector<1x2xf32> to vector<16x2xf32>
      %69 = arith.mulf %66, %68 : vector<16x2xf32>
      %70 = arith.addf %46, %69 : vector<16x2xf32>
      %c10 = arith.constant 10 : index
      %c0_28 = arith.constant 0 : index
      %c0_29 = arith.constant 0 : index
      %71 = vector.load %arg1[%c10, %c0_28, %c0_29] : memref<16x16x2xf32, #tpu.memory_space<vmem>>, vector<1x16x2xf32>
      %72 = vector.shape_cast %71 : vector<1x16x2xf32> to vector<16x2xf32>
      %73 = vector.extract_strided_slice %9 {offsets = [10, 0], sizes = [1, 2], strides = [1, 1]} : vector<16x2xf32> to vector<1x2xf32>
      %74 = vector.broadcast %73 : vector<1x2xf32> to vector<16x2xf32>
      %75 = arith.mulf %72, %74 : vector<16x2xf32>
      %76 = arith.addf %52, %75 : vector<16x2xf32>
      %c11 = arith.constant 11 : index
      %c0_30 = arith.constant 0 : index
      %c0_31 = arith.constant 0 : index
      %77 = vector.load %arg1[%c11, %c0_30, %c0_31] : memref<16x16x2xf32, #tpu.memory_space<vmem>>, vector<1x16x2xf32>
      %78 = vector.shape_cast %77 : vector<1x16x2xf32> to vector<16x2xf32>
      %79 = vector.extract_strided_slice %9 {offsets = [11, 0], sizes = [1, 2], strides = [1, 1]} : vector<16x2xf32> to vector<1x2xf32>
      %80 = vector.broadcast %79 : vector<1x2xf32> to vector<16x2xf32>
      %81 = arith.mulf %78, %80 : vector<16x2xf32>
      %82 = arith.addf %58, %81 : vector<16x2xf32>
      %c12 = arith.constant 12 : index
      %c0_32 = arith.constant 0 : index
      %c0_33 = arith.constant 0 : index
      %83 = vector.load %arg1[%c12, %c0_32, %c0_33] : memref<16x16x2xf32, #tpu.memory_space<vmem>>, vector<1x16x2xf32>
      %84 = vector.shape_cast %83 : vector<1x16x2xf32> to vector<16x2xf32>
      %85 = vector.extract_strided_slice %9 {offsets = [12, 0], sizes = [1, 2], strides = [1, 1]} : vector<16x2xf32> to vector<1x2xf32>
      %86 = vector.broadcast %85 : vector<1x2xf32> to vector<16x2xf32>
      %87 = arith.mulf %84, %86 : vector<16x2xf32>
      %88 = arith.addf %64, %87 : vector<16x2xf32>
      %c13 = arith.constant 13 : index
      %c0_34 = arith.constant 0 : index
      %c0_35 = arith.constant 0 : index
      %89 = vector.load %arg1[%c13, %c0_34, %c0_35] : memref<16x16x2xf32, #tpu.memory_space<vmem>>, vector<1x16x2xf32>
      %90 = vector.shape_cast %89 : vector<1x16x2xf32> to vector<16x2xf32>
      %91 = vector.extract_strided_slice %9 {offsets = [13, 0], sizes = [1, 2], strides = [1, 1]} : vector<16x2xf32> to vector<1x2xf32>
      %92 = vector.broadcast %91 : vector<1x2xf32> to vector<16x2xf32>
      %93 = arith.mulf %90, %92 : vector<16x2xf32>
      %94 = arith.addf %70, %93 : vector<16x2xf32>
      %c14 = arith.constant 14 : index
      %c0_36 = arith.constant 0 : index
      %c0_37 = arith.constant 0 : index
      %95 = vector.load %arg1[%c14, %c0_36, %c0_37] : memref<16x16x2xf32, #tpu.memory_space<vmem>>, vector<1x16x2xf32>
      %96 = vector.shape_cast %95 : vector<1x16x2xf32> to vector<16x2xf32>
      %97 = vector.extract_strided_slice %9 {offsets = [14, 0], sizes = [1, 2], strides = [1, 1]} : vector<16x2xf32> to vector<1x2xf32>
      %98 = vector.broadcast %97 : vector<1x2xf32> to vector<16x2xf32>
      %99 = arith.mulf %96, %98 : vector<16x2xf32>
      %100 = arith.addf %76, %99 : vector<16x2xf32>
      %c15 = arith.constant 15 : index
      %c0_38 = arith.constant 0 : index
      %c0_39 = arith.constant 0 : index
      %101 = vector.load %arg1[%c15, %c0_38, %c0_39] : memref<16x16x2xf32, #tpu.memory_space<vmem>>, vector<1x16x2xf32>
      %102 = vector.shape_cast %101 : vector<1x16x2xf32> to vector<16x2xf32>
      %103 = vector.extract_strided_slice %9 {offsets = [15, 0], sizes = [1, 2], strides = [1, 1]} : vector<16x2xf32> to vector<1x2xf32>
      %104 = vector.broadcast %103 : vector<1x2xf32> to vector<16x2xf32>
      %105 = arith.mulf %102, %104 : vector<16x2xf32>
      %106 = arith.addf %82, %105 : vector<16x2xf32>
      %107 = arith.addf %88, %94 : vector<16x2xf32>
      %108 = arith.addf %107, %100 : vector<16x2xf32>
      %109 = arith.addf %108, %106 : vector<16x2xf32>
      %110 = arith.addf %109, %arg9 : vector<16x2xf32>
      %c0_40 = arith.constant 0 : index
      %c0_41 = arith.constant 0 : index
      %111 = vector.load %arg3[%c0_40, %c0_41] : memref<16x2xf32, #tpu.memory_space<vmem>>, vector<16x2xf32>
      %112 = arith.maximumf %110, %111 : vector<16x2xf32>
      %c0_42 = arith.constant 0 : index
      %c0_43 = arith.constant 0 : index
      %113 = vector.load %arg4[%c0_42, %c0_43] : memref<16x2xf32, #tpu.memory_space<vmem>>, vector<16x2xf32>
      %114 = arith.minimumf %112, %113 : vector<16x2xf32>
      %115 = arith.subf %109, %114 : vector<16x2xf32>
      %116 = arith.addf %arg9, %115 : vector<16x2xf32>
      %117 = arith.mulf %115, %115 : vector<16x2xf32>
      %cst_44 = arith.constant dense<0.000000e+00> : vector<2xf32>
      %118 = vector.multi_reduction <add>, %117, %cst_44 [0] : vector<16x2xf32> to vector<2xf32>
      %119 = vector.shape_cast %118 : vector<2xf32> to vector<1x2xf32>
      %120 = math.sqrt %119 : vector<1x2xf32>
      %121 = vector.shape_cast %120 : vector<1x2xf32> to vector<1x1x2xf32>
      %cst_45 = arith.constant dense<0.000000e+00> : vector<1xf32>
      %122 = vector.multi_reduction <add>, %121, %cst_45 [1, 2] : vector<1x1x2xf32> to vector<1xf32>
      %123 = vector.shape_cast %122 : vector<1xf32> to vector<1x1x1xf32>
      %124 = vector.extract %123[0, 0, 0] : f32 from vector<1x1x1xf32>
      %125 = arith.mulf %124, %6 : f32
      %126 = arith.subf %114, %arg8 : vector<16x2xf32>
      %127 = arith.mulf %126, %126 : vector<16x2xf32>
      %cst_46 = arith.constant dense<0.000000e+00> : vector<2xf32>
      %128 = vector.multi_reduction <add>, %127, %cst_46 [0] : vector<16x2xf32> to vector<2xf32>
      %129 = vector.shape_cast %128 : vector<2xf32> to vector<1x2xf32>
      %130 = math.sqrt %129 : vector<1x2xf32>
      %131 = vector.shape_cast %130 : vector<1x2xf32> to vector<1x1x2xf32>
      %cst_47 = arith.constant dense<0.000000e+00> : vector<1xf32>
      %132 = vector.multi_reduction <add>, %131, %cst_47 [1, 2] : vector<1x1x2xf32> to vector<1xf32>
      %133 = vector.shape_cast %132 : vector<1xf32> to vector<1x1x1xf32>
      %134 = vector.extract %133[0, 0, 0] : f32 from vector<1x1x1xf32>
      %135 = arith.mulf %134, %6 : f32
      %cst_48 = arith.constant 1.000000e+00 : f32
      %136 = arith.mulf %cst_48, %135 : f32
      %137 = arith.mulf %109, %109 : vector<16x2xf32>
      %cst_49 = arith.constant dense<0.000000e+00> : vector<2xf32>
      %138 = vector.multi_reduction <add>, %137, %cst_49 [0] : vector<16x2xf32> to vector<2xf32>
      %139 = vector.shape_cast %138 : vector<2xf32> to vector<1x2xf32>
      %140 = math.sqrt %139 : vector<1x2xf32>
      %141 = vector.shape_cast %140 : vector<1x2xf32> to vector<1x1x2xf32>
      %cst_50 = arith.constant dense<0.000000e+00> : vector<1xf32>
      %142 = vector.multi_reduction <add>, %141, %cst_50 [1, 2] : vector<1x1x2xf32> to vector<1xf32>
      %143 = vector.shape_cast %142 : vector<1xf32> to vector<1x1x1xf32>
      %144 = vector.extract %143[0, 0, 0] : f32 from vector<1x1x1xf32>
      %145 = arith.mulf %144, %6 : f32
      %146 = arith.mulf %114, %114 : vector<16x2xf32>
      %cst_51 = arith.constant dense<0.000000e+00> : vector<2xf32>
      %147 = vector.multi_reduction <add>, %146, %cst_51 [0] : vector<16x2xf32> to vector<2xf32>
      %148 = vector.shape_cast %147 : vector<2xf32> to vector<1x2xf32>
      %149 = math.sqrt %148 : vector<1x2xf32>
      %150 = vector.shape_cast %149 : vector<1x2xf32> to vector<1x1x2xf32>
      %cst_52 = arith.constant dense<0.000000e+00> : vector<1xf32>
      %151 = vector.multi_reduction <add>, %150, %cst_52 [1, 2] : vector<1x1x2xf32> to vector<1xf32>
      %152 = vector.shape_cast %151 : vector<1xf32> to vector<1x1x1xf32>
      %153 = vector.extract %152[0, 0, 0] : f32 from vector<1x1x1xf32>
      %154 = arith.mulf %153, %6 : f32
      %155 = arith.mulf %9, %9 : vector<16x2xf32>
      %cst_53 = arith.constant dense<0.000000e+00> : vector<2xf32>
      %156 = vector.multi_reduction <add>, %155, %cst_53 [0] : vector<16x2xf32> to vector<2xf32>
      %157 = vector.shape_cast %156 : vector<2xf32> to vector<1x2xf32>
      %158 = math.sqrt %157 : vector<1x2xf32>
      %159 = vector.shape_cast %158 : vector<1x2xf32> to vector<1x1x2xf32>
      %cst_54 = arith.constant dense<0.000000e+00> : vector<1xf32>
      %160 = vector.multi_reduction <add>, %159, %cst_54 [1, 2] : vector<1x1x2xf32> to vector<1xf32>
      %161 = vector.shape_cast %160 : vector<1xf32> to vector<1x1x1xf32>
      %162 = vector.extract %161[0, 0, 0] : f32 from vector<1x1x1xf32>
      %163 = arith.mulf %162, %6 : f32
      %164 = arith.maximumf %145, %154 : f32
      %cst_55 = arith.constant 1.000000e-03 : f32
      %165 = arith.mulf %cst_55, %164 : f32
      %cst_56 = arith.constant 4.000000e-03 : f32
      %166 = arith.addf %cst_56, %165 : f32
      %cst_57 = arith.constant 1.000000e-03 : f32
      %167 = arith.mulf %cst_57, %163 : f32
      %cst_58 = arith.constant 4.000000e-03 : f32
      %168 = arith.addf %cst_58, %167 : f32
      %169 = arith.cmpf olt, %125, %166 : f32
      %170 = arith.cmpf olt, %136, %168 : f32
      %171 = arith.andi %169, %170 : i1
      %172 = arith.extui %171 : i1 to i32
      %c1_i32_59 = arith.constant 1 : i32
      %173 = arith.addi %arg6, %c1_i32_59 : i32
      scf.yield %173, %109, %114, %116, %172 : i32, vector<16x2xf32>, vector<16x2xf32>, vector<16x2xf32>, i32
    }
    %c0 = arith.constant 0 : index
    %c0_4 = arith.constant 0 : index
    %8 = vector.load %arg5[%c0, %c0_4] : memref<16x2xf32, #tpu.memory_space<vmem>>, vector<16x2xf32>
    tpu.vector_store %arg5[%c0, %c0_4], %7#1 {strides = array<i32>} : memref<16x2xf32, #tpu.memory_space<vmem>>, vector<16x2xf32>,
    return
  }
  func.func @transform_0(%arg0: i32) -> (i32, i32, i32) {
    %c0_i32 = arith.constant 0 : i32
    %c0_i32_0 = arith.constant 0 : i32
    %c0_i32_1 = arith.constant 0 : i32
    return %c0_i32, %c0_i32_0, %arg0 : i32, i32, i32
  }
  func.func @transform_1(%arg0: i32) -> (i32, i32) {
    %c0_i32 = arith.constant 0 : i32
    %c0_i32_0 = arith.constant 0 : i32
    return %c0_i32, %arg0 : i32, i32
  }
  func.func @transform_2(%arg0: i32) -> (i32, i32) {
    %c0_i32 = arith.constant 0 : i32
    %c0_i32_0 = arith.constant 0 : i32
    return %c0_i32, %arg0 : i32, i32
  }
  func.func @transform_3(%arg0: i32) -> (i32, i32) {
    %c0_i32 = arith.constant 0 : i32
    %c0_i32_0 = arith.constant 0 : i32
    return %c0_i32, %arg0 : i32, i32
  }
  func.func @transform_4(%arg0: i32) -> (i32, i32) {
    %c0_i32 = arith.constant 0 : i32
    %c0_i32_0 = arith.constant 0 : i32
    return %c0_i32, %arg0 : i32, i32
  }
}

</mosaic_0001>

<llo_original>
// kernel: tpu_custom_call.1
$region0: #{tpu_custom_call.1}
  #allocation0 [shape = 'u32[]', space=smem, size = 0x4, offset = 0x4, fixed_abs, tag = 'smem constant byte address 0x4 - core index']
  #allocation1 [shape = 'u32[72,128]{1,0:T(1,128)}', space=vmem, size = 0x9000, scoped, tag = 'internal scratch']
  #allocation2 [shape = 'f32[16,2]{1,0:T(8,128)}', space=vmem, size = 0x2000, scoped, tag = 'scratch operand']
  %s0 = inlined_call_operand.vmem [shape: f32[16,16,2], index: 0, kind: input, shape index: {}]
  %s1 = inlined_call_operand.vmem [shape: f32[16,2], index: 1, kind: input, shape index: {}]
  %s2 = inlined_call_operand.vmem [shape: f32[16,2], index: 2, kind: input, shape index: {}]
  %s3 = inlined_call_operand.vmem [shape: f32[16,2], index: 3, kind: input, shape index: {}]
  %s4 = inlined_call_operand.vmem [shape: f32[16,2], index: 4, kind: output, shape index: {}]
  %s5 = sld [smem:[#allocation0]]
  $region33: #{tpu_custom_call.1} parent=0
    _
  %s7 = ssub.s32 1, %s5
  %s8 = scalar_select 0, %s7, %s5
  // Predicated region
  $region2: #{tpu_custom_call.1} parent=0 // pred_check
    _
  $region3: #{tpu_custom_call.1} parent=0 // pred_check_branch
    %10 = sbr.rel (0) target = $region5
  $region4: #{tpu_custom_call.1} parent=0 // pred_region
    _
  $region5: #{tpu_custom_call.1} parent=0 // pred_fallthru
    _
  // Predicated region
  $region6: #{tpu_custom_call.1} parent=0 // pred_check
    _
  $region7: #{tpu_custom_call.1} parent=0 // pred_check_branch
    %12 = sbr.rel (0) target = $region9
  $region8: #{tpu_custom_call.1} parent=0 // pred_region
    _
  $region9: #{tpu_custom_call.1} parent=0 // pred_fallthru
    _
  // Predicated region
  $region10: #{tpu_custom_call.1} parent=0 // pred_check
    _
  $region11: #{tpu_custom_call.1} parent=0 // pred_check_branch
    %14 = sbr.rel (0) target = $region13
  $region12: #{tpu_custom_call.1} parent=0 // pred_region
    _
  $region13: #{tpu_custom_call.1} parent=0 // pred_fallthru
    _
  // Predicated region
  $region14: #{tpu_custom_call.1} parent=0 // pred_check
    _
  $region15: #{tpu_custom_call.1} parent=0 // pred_check_branch
    %16 = sbr.rel (0) target = $region17
  $region16: #{tpu_custom_call.1} parent=0 // pred_region
    _
  $region17: #{tpu_custom_call.1} parent=0 // pred_fallthru
    _
  %s17 = smul.u32 0, 2
  %s18 = ssub.s32 2, %s17
  %p19 = scmp.gt.s32.totalorder %s18, 1
  %s20 = scalar_select %p19, %s18, 1
  %p21 = scmp.lt.s32.totalorder %s20, 2
  %s22 = scalar_select %p21, %s20, 2
  %s23 = scvt.s32.f32 %s22
  %v24 = vstv %s23
  %v25 = vrcp.pop %v24
  %v26 = vmul.f32 %v24, %v25
  %v27 = vsub.f32 1.0, %v26
  %v28 = vmul.f32 %v25, %v27
  %v29 = vadd.f32 %v25, %v28
  %vm30 = vweird.f32 %v24
  %vm31 = vweird.f32 %v25
  %vm32 = vmor %vm30, %vm31
  %v33 = vsel %vm32, %v25, %v29
  %v34 = vand.u32 2147483647, %v24
  %vm35 = vcmp.eq.f32.partialorder %v34, 8.507059e+37
  %v36 = vand.u32 %v24, 2147483648
  %v37 = vor.u32 1.1754944e-38, %v36
  %v38 = vsel %vm35, %v37, %v33
  %s39 = vtos %v38
  // While loop
  $region18: #{tpu_custom_call.1} parent=0 // loop_pre_header
    _
  $region19: #{tpu_custom_call.1} parent=0 // loop_header
    %s41 = sphi 0, %s392
    %v42 = vphi 0.0, %v193
    %v43 = vphi 0.0, %v194
    %v44 = vphi 0.0, %v203
    %v45 = vphi 0.0, %v204
    %v46 = vphi 0.0, %v207
    %v47 = vphi 0.0, %v208
    %s48 = sphi 0, %s391
    %p49 = scmp.lt.s32.totalorder %s41, 200
    %p50 = scmp.eq.s32.totalorder %s48, 0
    %p51 = pnand %p49, %p50
    %p52 = pneg %p51
  $region20: #{tpu_custom_call.1} parent=0 // loop_header_branch
    %54 = sbr.rel (%p51) target = $region24
  $region21: #{tpu_custom_call.1} parent=0 // loop_body
    %v55 = vsub.f32 %v44, %v46
    %v56 = vsub.f32 %v45, %v47
    %vm57 = vcmask 15360
    %58 = vst.msk [vmem:[#allocation2] sm:$0xff] %vm57, %v55
    %59 = vst.msk [vmem:[#allocation2 + $0x8] sm:$0xff] %vm57, %v56
    %v60 = vld [vmem:[%s1] sm:$0xff]
    %v61 = vld [vmem:[%s1 + $0x8] sm:$0xff]
    %v62 = vld [vmem:[%s0] sm:$0xff]
    %v63 = vld [vmem:[%s0 + $0x8] sm:$0xff]
    %v64 = vld [vmem:[#allocation2] ss:$0 sm:$0xff]
    %v65 = vmul.f32 %v62, %v64
    %v66 = vmul.f32 %v63, %v64
    %v67 = vadd.f32 %v60, %v65
    %v68 = vadd.f32 %v61, %v66
    %s69 = scalar_lea.vmem %s0, 16
    %v70 = vld [vmem:[%s69] sm:$0xff]
    %v71 = vld [vmem:[%s69 + $0x8] sm:$0xff]
    %v72 = vld [vmem:[#allocation2 + $0x1] ss:$0 sm:$0xff]
    %v73 = vmul.f32 %v70, %v72
    %v74 = vmul.f32 %v71, %v72
    %v75 = vadd.f32 %v73, 0.0
    %v76 = vadd.f32 %v74, 0.0
    %s77 = scalar_lea.vmem %s0, 32
    %v78 = vld [vmem:[%s77] sm:$0xff]
    %v79 = vld [vmem:[%s77 + $0x8] sm:$0xff]
    %v80 = vld [vmem:[#allocation2 + $0x2] ss:$0 sm:$0xff]
    %v81 = vmul.f32 %v78, %v80
    %v82 = vmul.f32 %v79, %v80
    %v83 = vadd.f32 %v81, 0.0
    %v84 = vadd.f32 %v82, 0.0
    %s85 = scalar_lea.vmem %s0, 48
    %v86 = vld [vmem:[%s85] sm:$0xff]
    %v87 = vld [vmem:[%s85 + $0x8] sm:$0xff]
    %v88 = vld [vmem:[#allocation2 + $0x3] ss:$0 sm:$0xff]
    %v89 = vmul.f32 %v86, %v88
    %v90 = vmul.f32 %v87, %v88
    %v91 = vadd.f32 %v89, 0.0
    %v92 = vadd.f32 %v90, 0.0
    %s93 = scalar_lea.vmem %s0, 64
    %v94 = vld [vmem:[%s93] sm:$0xff]
    %v95 = vld [vmem:[%s93 + $0x8] sm:$0xff]
    %v96 = vld [vmem:[#allocation2 + $0x4] ss:$0 sm:$0xff]
    %v97 = vmul.f32 %v94, %v96
    %v98 = vmul.f32 %v95, %v96
    %v99 = vadd.f32 %v67, %v97
    %v100 = vadd.f32 %v68, %v98
    %s101 = scalar_lea.vmem %s0, 80
    %v102 = vld [vmem:[%s101] sm:$0xff]
    %v103 = vld [vmem:[%s101 + $0x8] sm:$0xff]
    %v104 = vld [vmem:[#allocation2 + $0x5] ss:$0 sm:$0xff]
    %v105 = vmul.f32 %v102, %v104
    %v106 = vmul.f32 %v103, %v104
    %v107 = vadd.f32 %v75, %v105
    %v108 = vadd.f32 %v76, %v106
    %s109 = scalar_lea.vmem %s0, 96
    %v110 = vld [vmem:[%s109] sm:$0xff]
    %v111 = vld [vmem:[%s109 + $0x8] sm:$0xff]
    %v112 = vld [vmem:[#allocation2 + $0x6] ss:$0 sm:$0xff]
    %v113 = vmul.f32 %v110, %v112
    %v114 = vmul.f32 %v111, %v112
    %v115 = vadd.f32 %v83, %v113
    %v116 = vadd.f32 %v84, %v114
    %s117 = scalar_lea.vmem %s0, 112
    %v118 = vld [vmem:[%s117] sm:$0xff]
    %v119 = vld [vmem:[%s117 + $0x8] sm:$0xff]
    %v120 = vld [vmem:[#allocation2 + $0x7] ss:$0 sm:$0xff]
    %v121 = vmul.f32 %v118, %v120
    %v122 = vmul.f32 %v119, %v120
    %v123 = vadd.f32 %v91, %v121
    %v124 = vadd.f32 %v92, %v122
    %s125 = scalar_lea.vmem %s0, 128
    %v126 = vld [vmem:[%s125] sm:$0xff]
    %v127 = vld [vmem:[%s125 + $0x8] sm:$0xff]
    %v128 = vld [vmem:[#allocation2 + $0x8] ss:$0 sm:$0xff]
    %v129 = vmul.f32 %v126, %v128
    %v130 = vmul.f32 %v127, %v128
    %v131 = vadd.f32 %v99, %v129
    %v132 = vadd.f32 %v100, %v130
    %s133 = scalar_lea.vmem %s0, 144
    %v134 = vld [vmem:[%s133] sm:$0xff]
    %v135 = vld [vmem:[%s133 + $0x8] sm:$0xff]
    %v136 = vld [vmem:[#allocation2 + $0x9] ss:$0 sm:$0xff]
    %v137 = vmul.f32 %v134, %v136
    %v138 = vmul.f32 %v135, %v136
    %v139 = vadd.f32 %v107, %v137
    %v140 = vadd.f32 %v108, %v138
    %s141 = scalar_lea.vmem %s0, 160
    %v142 = vld [vmem:[%s141] sm:$0xff]
    %v143 = vld [vmem:[%s141 + $0x8] sm:$0xff]
    %v144 = vld [vmem:[#allocation2 + $0xa] ss:$0 sm:$0xff]
    %v145 = vmul.f32 %v142, %v144
    %v146 = vmul.f32 %v143, %v144
    %v147 = vadd.f32 %v115, %v145
    %v148 = vadd.f32 %v116, %v146
    %s149 = scalar_lea.vmem %s0, 176
    %v150 = vld [vmem:[%s149] sm:$0xff]
    %v151 = vld [vmem:[%s149 + $0x8] sm:$0xff]
    %v152 = vld [vmem:[#allocation2 + $0xb] ss:$0 sm:$0xff]
    %v153 = vmul.f32 %v150, %v152
    %v154 = vmul.f32 %v151, %v152
    %v155 = vadd.f32 %v123, %v153
    %v156 = vadd.f32 %v124, %v154
    %s157 = scalar_lea.vmem %s0, 192
    %v158 = vld [vmem:[%s157] sm:$0xff]
    %v159 = vld [vmem:[%s157 + $0x8] sm:$0xff]
    %v160 = vld [vmem:[#allocation2 + $0xc] ss:$0 sm:$0xff]
    %v161 = vmul.f32 %v158, %v160
    %v162 = vmul.f32 %v159, %v160
    %v163 = vadd.f32 %v131, %v161
    %v164 = vadd.f32 %v132, %v162
    %s165 = scalar_lea.vmem %s0, 208
    %v166 = vld [vmem:[%s165] sm:$0xff]
    %v167 = vld [vmem:[%s165 + $0x8] sm:$0xff]
    %v168 = vld [vmem:[#allocation2 + $0xd] ss:$0 sm:$0xff]
    %v169 = vmul.f32 %v166, %v168
    %v170 = vmul.f32 %v167, %v168
    %v171 = vadd.f32 %v139, %v169
    %v172 = vadd.f32 %v140, %v170
    %s173 = scalar_lea.vmem %s0, 224
    %v174 = vld [vmem:[%s173] sm:$0xff]
    %v175 = vld [vmem:[%s173 + $0x8] sm:$0xff]
    %v176 = vld [vmem:[#allocation2 + $0xe] ss:$0 sm:$0xff]
    %v177 = vmul.f32 %v174, %v176
    %v178 = vmul.f32 %v175, %v176
    %v179 = vadd.f32 %v147, %v177
    %v180 = vadd.f32 %v148, %v178
    %s181 = scalar_lea.vmem %s0, 240
    %v182 = vld [vmem:[%s181] sm:$0xff]
    %v183 = vld [vmem:[%s181 + $0x8] sm:$0xff]
    %v184 = vld [vmem:[#allocation2 + $0xf] ss:$0 sm:$0xff]
    %v185 = vmul.f32 %v182, %v184
    %v186 = vmul.f32 %v183, %v184
    %v187 = vadd.f32 %v155, %v185
    %v188 = vadd.f32 %v156, %v186
    %v189 = vadd.f32 %v163, %v171
    %v190 = vadd.f32 %v164, %v172
    %v191 = vadd.f32 %v189, %v179
    %v192 = vadd.f32 %v190, %v180
    %v193 = vadd.f32 %v191, %v187
    %v194 = vadd.f32 %v192, %v188
    %v195 = vadd.f32 %v193, %v46
    %v196 = vadd.f32 %v194, %v47
    %v197 = vld [vmem:[%s2] sm:$0xff]
    %v198 = vld [vmem:[%s2 + $0x8] sm:$0xff]
    %v199 = vmax.f32 %v195, %v197
    %v200 = vmax.f32 %v196, %v198
    %v201 = vld [vmem:[%s3] sm:$0xff]
    %v202 = vld [vmem:[%s3 + $0x8] sm:$0xff]
    %v203 = vmin.f32 %v199, %v201
    %v204 = vmin.f32 %v200, %v202
    %v205 = vsub.f32 %v193, %v203
    %v206 = vsub.f32 %v194, %v204
    %v207 = vadd.f32 %v46, %v205
    %v208 = vadd.f32 %v47, %v206
    %v209 = vmul.f32 %v205, %v205
    %v210 = vmul.f32 %v206, %v206
    %v211 = vsel %vm57, %v209, 0.0
    %v212 = vsel %vm57, %v210, 0.0
    %v213 = vadd.f32 %v211, %v212
    %v214 = vrot.slane %v213, 4
    %v215 = vadd.f32 %v213, %v214
    %v216 = vrot.slane %v215, 2
    %v217 = vadd.f32 %v215, %v216
    %v218 = vrot.slane %v217, 1
    %v219 = vadd.f32 %v217, %v218
    %v220 = vrsqrt.pop %v219
    %v221 = vmul.f32 %v220, %v219
    %v222 = vmul.f32 %v221, %v220
    %v223 = vmul.f32 0.5, %v222
    %v224 = vsub.f32 1.5, %v223
    %v225 = vmul.f32 %v220, %v224
    %v226 = vmul.f32 %v219, %v225
    %vm227 = vcmp.eq.f32.partialorder %v219, inf
    %v228 = vsel %vm227, %v219, %v226
    %vm229 = vcmp.eq.f32.partialorder %v219, 0.0
    %v230 = vand.u32 %v219, 2147483648
    %v231 = vsel %vm229, %v230, %v228
    %vm232 = vcmask 8192
    %v233 = vsel %vm232, %v231, 0.0
    %234 = vadd.xlane.f32.xlu0 %v233
    %v235 = vpop.xlane.xlu0 %234
    %v236 = vrot.slane %v235, 4
    %v237 = vadd.f32 %v235, %v236
    %v238 = vrot.slane %v237, 2
    %v239 = vadd.f32 %v237, %v238
    %v240 = vrot.slane %v239, 1
    %v241 = vadd.f32 %v239, %v240
    %s242 = vtos %v241
    %s243 = smul.f32 %s242, %s39
    %v244 = vsub.f32 %v203, %v44
    %v245 = vsub.f32 %v204, %v45
    %v246 = vmul.f32 %v244, %v244
    %v247 = vmul.f32 %v245, %v245
    %v248 = vsel %vm57, %v246, 0.0
    %v249 = vsel %vm57, %v247, 0.0
    %v250 = vadd.f32 %v248, %v249
    %v251 = vrot.slane %v250, 4
    %v252 = vadd.f32 %v250, %v251
    %v253 = vrot.slane %v252, 2
    %v254 = vadd.f32 %v252, %v253
    %v255 = vrot.slane %v254, 1
    %v256 = vadd.f32 %v254, %v255
    %v257 = vrsqrt.pop %v256
    %v258 = vmul.f32 %v257, %v256
    %v259 = vmul.f32 %v258, %v257
    %v260 = vmul.f32 0.5, %v259
    %v261 = vsub.f32 1.5, %v260
    %v262 = vmul.f32 %v257, %v261
    %v263 = vmul.f32 %v256, %v262
    %vm264 = vcmp.eq.f32.partialorder %v256, inf
    %v265 = vsel %vm264, %v256, %v263
    %vm266 = vcmp.eq.f32.partialorder %v256, 0.0
    %v267 = vand.u32 %v256, 2147483648
    %v268 = vsel %vm266, %v267, %v265
    %v269 = vsel %vm232, %v268, 0.0
    %270 = vadd.xlane.f32.xlu0 %v269
    %v271 = vpop.xlane.xlu0 %270
    %v272 = vrot.slane %v271, 4
    %v273 = vadd.f32 %v271, %v272
    %v274 = vrot.slane %v273, 2
    %v275 = vadd.f32 %v273, %v274
    %v276 = vrot.slane %v275, 1
    %v277 = vadd.f32 %v275, %v276
    %s278 = vtos %v277
    %s279 = smul.f32 %s278, %s39
    %v280 = vmul.f32 %v193, %v193
    %v281 = vmul.f32 %v194, %v194
    %v282 = vsel %vm57, %v280, 0.0
    %v283 = vsel %vm57, %v281, 0.0
    %v284 = vadd.f32 %v282, %v283
    %v285 = vrot.slane %v284, 4
    %v286 = vadd.f32 %v284, %v285
    %v287 = vrot.slane %v286, 2
    %v288 = vadd.f32 %v286, %v287
    %v289 = vrot.slane %v288, 1
    %v290 = vadd.f32 %v288, %v289
    %v291 = vrsqrt.pop %v290
    %v292 = vmul.f32 %v291, %v290
    %v293 = vmul.f32 %v292, %v291
    %v294 = vmul.f32 0.5, %v293
    %v295 = vsub.f32 1.5, %v294
    %v296 = vmul.f32 %v291, %v295
    %v297 = vmul.f32 %v290, %v296
    %vm298 = vcmp.eq.f32.partialorder %v290, inf
    %v299 = vsel %vm298, %v290, %v297
    %vm300 = vcmp.eq.f32.partialorder %v290, 0.0
    %v301 = vand.u32 %v290, 2147483648
    %v302 = vsel %vm300, %v301, %v299
    %v303 = vsel %vm232, %v302, 0.0
    %304 = vadd.xlane.f32.xlu0 %v303
    %v305 = vpop.xlane.xlu0 %304
    %v306 = vrot.slane %v305, 4
    %v307 = vadd.f32 %v305, %v306
    %v308 = vrot.slane %v307, 2
    %v309 = vadd.f32 %v307, %v308
    %v310 = vrot.slane %v309, 1
    %v311 = vadd.f32 %v309, %v310
    %s312 = vtos %v311
    %s313 = smul.f32 %s312, %s39
    %v314 = vmul.f32 %v203, %v203
    %v315 = vmul.f32 %v204, %v204
    %v316 = vsel %vm57, %v314, 0.0
    %v317 = vsel %vm57, %v315, 0.0
    %v318 = vadd.f32 %v316, %v317
    %v319 = vrot.slane %v318, 4
    %v320 = vadd.f32 %v318, %v319
    %v321 = vrot.slane %v320, 2
    %v322 = vadd.f32 %v320, %v321
    %v323 = vrot.slane %v322, 1
    %v324 = vadd.f32 %v322, %v323
    %v325 = vrsqrt.pop %v324
    %v326 = vmul.f32 %v325, %v324
    %v327 = vmul.f32 %v326, %v325
    %v328 = vmul.f32 0.5, %v327
    %v329 = vsub.f32 1.5, %v328
    %v330 = vmul.f32 %v325, %v329
    %v331 = vmul.f32 %v324, %v330
    %vm332 = vcmp.eq.f32.partialorder %v324, inf
    %v333 = vsel %vm332, %v324, %v331
    %vm334 = vcmp.eq.f32.partialorder %v324, 0.0
    %v335 = vand.u32 %v324, 2147483648
    %v336 = vsel %vm334, %v335, %v333
    %v337 = vsel %vm232, %v336, 0.0
    %338 = vadd.xlane.f32.xlu0 %v337
    %v339 = vpop.xlane.xlu0 %338
    %v340 = vrot.slane %v339, 4
    %v341 = vadd.f32 %v339, %v340
    %v342 = vrot.slane %v341, 2
    %v343 = vadd.f32 %v341, %v342
    %v344 = vrot.slane %v343, 1
    %v345 = vadd.f32 %v343, %v344
    %s346 = vtos %v345
    %s347 = smul.f32 %s346, %s39
    %v348 = vmul.f32 %v55, %v55
    %v349 = vmul.f32 %v56, %v56
    %v350 = vsel %vm57, %v348, 0.0
    %v351 = vsel %vm57, %v349, 0.0
    %v352 = vadd.f32 %v350, %v351
    %v353 = vrot.slane %v352, 4
    %v354 = vadd.f32 %v352, %v353
    %v355 = vrot.slane %v354, 2
    %v356 = vadd.f32 %v354, %v355
    %v357 = vrot.slane %v356, 1
    %v358 = vadd.f32 %v356, %v357
    %v359 = vrsqrt.pop %v358
    %v360 = vmul.f32 %v359, %v358
    %v361 = vmul.f32 %v360, %v359
    %v362 = vmul.f32 0.5, %v361
    %v363 = vsub.f32 1.5, %v362
    %v364 = vmul.f32 %v359, %v363
    %v365 = vmul.f32 %v358, %v364
    %vm366 = vcmp.eq.f32.partialorder %v358, inf
    %v367 = vsel %vm366, %v358, %v365
    %vm368 = vcmp.eq.f32.partialorder %v358, 0.0
    %v369 = vand.u32 %v358, 2147483648
    %v370 = vsel %vm368, %v369, %v367
    %v371 = vsel %vm232, %v370, 0.0
    %372 = vadd.xlane.f32.xlu0 %v371
    %v373 = vpop.xlane.xlu0 %372
    %v374 = vrot.slane %v373, 4
    %v375 = vadd.f32 %v373, %v374
    %v376 = vrot.slane %v375, 2
    %v377 = vadd.f32 %v375, %v376
    %v378 = vrot.slane %v377, 1
    %v379 = vadd.f32 %v377, %v378
    %s380 = vtos %v379
    %s381 = smul.f32 %s380, %s39
    %s382 = smax.f32 %s313, %s347
    %s383 = smul.f32 %s382, 0.001
    %s384 = sadd.f32 %s383, 0.004
    %s385 = smul.f32 %s381, 0.001
    %s386 = sadd.f32 %s385, 0.004
    %p387 = scmp.lt.f32.partialorder %s243, %s384
    %p388 = scmp.lt.f32.partialorder %s279, %s386
    %p389 = pnand %p387, %p388
    %p390 = pneg %p389
    %s391 = scalar_select %p390, 1, 0
    %s392 = sadd.s32 %s41, 1
  $region22: #{tpu_custom_call.1} parent=0 // loop_footer
    _
  $region23: #{tpu_custom_call.1} parent=0 // loop_footer_branch
    %40 = sbr.rel target = $region19
  $region24: #{tpu_custom_call.1} parent=0 // loop_exit
    _
  %vm393 = vcmask 15360
  %394 = vst.msk [vmem:[%s4] sm:$0xff] %vm393, %v42
  %395 = vst.msk [vmem:[%s4 + $0x8] sm:$0xff] %vm393, %v43
  // Predicated region
  $region25: #{tpu_custom_call.1} parent=0 // pred_check
    _
  $region26: #{tpu_custom_call.1} parent=0 // pred_check_branch
    %397 = sbr.rel (0) target = $region28
  $region27: #{tpu_custom_call.1} parent=0 // pred_region
    _
  $region28: #{tpu_custom_call.1} parent=0 // pred_fallthru
    _
  // Predicated region
  $region29: #{tpu_custom_call.1} parent=0 // pred_check
    _
  $region30: #{tpu_custom_call.1} parent=0 // pred_check_branch
    %399 = sbr.rel (0) target = $region32
  $region31: #{tpu_custom_call.1} parent=0 // pred_region
    _
  $region32: #{tpu_custom_call.1} parent=0 // pred_fallthru
    _

// kernel: tpu_custom_call.1
$region0: #{tpu_custom_call.1}
  #allocation0 [shape = 'u32[]', space=smem, size = 0x4, offset = 0x4, fixed_abs, tag = 'smem constant byte address 0x4 - core index']
  #allocation1 [shape = 'u32[72,128]{1,0:T(1,128)}', space=vmem, size = 0x9000, scoped, tag = 'internal scratch']
  %s0 = inlined_call_operand.vmem [shape: f32[16,16,2], index: 0, kind: input, shape index: {}]
  %s1 = inlined_call_operand.vmem [shape: f32[16,2], index: 1, kind: input, shape index: {}]
  %s2 = inlined_call_operand.vmem [shape: f32[16,2], index: 2, kind: input, shape index: {}]
  %s3 = inlined_call_operand.vmem [shape: f32[16,2], index: 3, kind: input, shape index: {}]
  %s4 = inlined_call_operand.vmem [shape: f32[16,2], index: 4, kind: output, shape index: {}]
  %s5 = sld [smem:[#allocation0]]
  $region33: #{tpu_custom_call.1} parent=0
    _
  %s7 = ssub.s32 1, %s5
  %s8 = scalar_select 0, %s7, %s5
  // Predicated region
  $region2: #{tpu_custom_call.1} parent=0 // pred_check
    _
  $region3: #{tpu_custom_call.1} parent=0 // pred_check_branch
    %10 = sbr.rel (0) target = $region5
  $region4: #{tpu_custom_call.1} parent=0 // pred_region
    _
  $region5: #{tpu_custom_call.1} parent=0 // pred_fallthru
    _
  // Predicated region
  $region6: #{tpu_custom_call.1} parent=0 // pred_check
    _
  $region7: #{tpu_custom_call.1} parent=0 // pred_check_branch
    %12 = sbr.rel (0) target = $region9
  $region8: #{tpu_custom_call.1} parent=0 // pred_region
    _
  $region9: #{tpu_custom_call.1} parent=0 // pred_fallthru
    _
  // Predicated region
  $region10: #{tpu_custom_call.1} parent=0 // pred_check
    _
  $region11: #{tpu_custom_call.1} parent=0 // pred_check_branch
    %14 = sbr.rel (0) target = $region13
  $region12: #{tpu_custom_call.1} parent=0 // pred_region
    _
  $region13: #{tpu_custom_call.1} parent=0 // pred_fallthru
    _
  // Predicated region
  $region14: #{tpu_custom_call.1} parent=0 // pred_check
    _
  $region15: #{tpu_custom_call.1} parent=0 // pred_check_branch
    %16 = sbr.rel (0) target = $region17
  $region16: #{tpu_custom_call.1} parent=0 // pred_region
    _
  $region17: #{tpu_custom_call.1} parent=0 // pred_fallthru
    _
  %s17 = smul.u32 0, 2
  %s18 = ssub.s32 2, %s17
  %p19 = scmp.gt.s32.totalorder %s18, 1
  %s20 = scalar_select %p19, %s18, 1
  %p21 = scmp.lt.s32.totalorder %s20, 2
  %s22 = scalar_select %p21, %s20, 2
  %s23 = scvt.s32.f32 %s22
  %v24 = vstv %s23
  %v25 = vrcp.pop %v24
  %v26 = vmul.f32 %v24, %v25
  %v27 = vsub.f32 1.0, %v26
  %v28 = vmul.f32 %v25, %v27
  %v29 = vadd.f32 %v25, %v28
  %vm30 = vweird.f32 %v24
  %vm31 = vweird.f32 %v25
  %vm32 = vmor %vm30, %vm31
  %v33 = vsel %vm32, %v25, %v29
  %v34 = vand.u32 2147483647, %v24
  %vm35 = vcmp.eq.f32.partialorder %v34, 8.507059e+37
  %v36 = vand.u32 %v24, 2147483648
  %v37 = vor.u32 1.1754944e-38, %v36
  %v38 = vsel %vm35, %v37, %v33
  %s39 = vtos %v38
  // While loop
  $region18: #{tpu_custom_call.1} parent=0 // loop_pre_header
    _
  $region19: #{tpu_custom_call.1} parent=0 // loop_header
    %s41 = sphi 0, %s390
    %v42 = vphi 0.0, %v190
    %v43 = vphi 0.0, %v191
    %v44 = vphi 0.0, %v200
    %v45 = vphi 0.0, %v201
    %v46 = vphi 0.0, %v204
    %v47 = vphi 0.0, %v205
    %s48 = sphi 0, %s389
    %p49 = scmp.lt.s32.totalorder %s41, 200
    %p50 = scmp.eq.s32.totalorder %s48, 0
    %p51 = pnand %p49, %p50
    %p52 = pneg %p51
  $region20: #{tpu_custom_call.1} parent=0 // loop_header_branch
    %54 = sbr.rel (%p51) target = $region24
  $region21: #{tpu_custom_call.1} parent=0 // loop_body
    %v55 = vsub.f32 %v44, %v46
    %v56 = vsub.f32 %v45, %v47
    %v57 = vld [vmem:[%s1] sm:$0xff]
    %v58 = vld [vmem:[%s1 + $0x8] sm:$0xff]
    %v59 = vld [vmem:[%s0] sm:$0xff]
    %v60 = vld [vmem:[%s0 + $0x8] sm:$0xff]
    %v61 = vperm.slane %v55, 0
    %v62 = vmul.f32 %v59, %v61
    %v63 = vmul.f32 %v60, %v61
    %v64 = vadd.f32 %v57, %v62
    %v65 = vadd.f32 %v58, %v63
    %s66 = scalar_lea.vmem %s0, 16
    %v67 = vld [vmem:[%s66] sm:$0xff]
    %v68 = vld [vmem:[%s66 + $0x8] sm:$0xff]
    %v69 = vperm.slane %v55, 1
    %v70 = vmul.f32 %v67, %v69
    %v71 = vmul.f32 %v68, %v69
    %v72 = vadd.f32 %v70, 0.0
    %v73 = vadd.f32 %v71, 0.0
    %s74 = scalar_lea.vmem %s0, 32
    %v75 = vld [vmem:[%s74] sm:$0xff]
    %v76 = vld [vmem:[%s74 + $0x8] sm:$0xff]
    %v77 = vperm.slane %v55, 2
    %v78 = vmul.f32 %v75, %v77
    %v79 = vmul.f32 %v76, %v77
    %v80 = vadd.f32 %v78, 0.0
    %v81 = vadd.f32 %v79, 0.0
    %s82 = scalar_lea.vmem %s0, 48
    %v83 = vld [vmem:[%s82] sm:$0xff]
    %v84 = vld [vmem:[%s82 + $0x8] sm:$0xff]
    %v85 = vperm.slane %v55, 3
    %v86 = vmul.f32 %v83, %v85
    %v87 = vmul.f32 %v84, %v85
    %v88 = vadd.f32 %v86, 0.0
    %v89 = vadd.f32 %v87, 0.0
    %s90 = scalar_lea.vmem %s0, 64
    %v91 = vld [vmem:[%s90] sm:$0xff]
    %v92 = vld [vmem:[%s90 + $0x8] sm:$0xff]
    %v93 = vperm.slane %v55, 4
    %v94 = vmul.f32 %v91, %v93
    %v95 = vmul.f32 %v92, %v93
    %v96 = vadd.f32 %v64, %v94
    %v97 = vadd.f32 %v65, %v95
    %s98 = scalar_lea.vmem %s0, 80
    %v99 = vld [vmem:[%s98] sm:$0xff]
    %v100 = vld [vmem:[%s98 + $0x8] sm:$0xff]
    %v101 = vperm.slane %v55, 5
    %v102 = vmul.f32 %v99, %v101
    %v103 = vmul.f32 %v100, %v101
    %v104 = vadd.f32 %v72, %v102
    %v105 = vadd.f32 %v73, %v103
    %s106 = scalar_lea.vmem %s0, 96
    %v107 = vld [vmem:[%s106] sm:$0xff]
    %v108 = vld [vmem:[%s106 + $0x8] sm:$0xff]
    %v109 = vperm.slane %v55, 6
    %v110 = vmul.f32 %v107, %v109
    %v111 = vmul.f32 %v108, %v109
    %v112 = vadd.f32 %v80, %v110
    %v113 = vadd.f32 %v81, %v111
    %s114 = scalar_lea.vmem %s0, 112
    %v115 = vld [vmem:[%s114] sm:$0xff]
    %v116 = vld [vmem:[%s114 + $0x8] sm:$0xff]
    %v117 = vperm.slane %v55, 7
    %v118 = vmul.f32 %v115, %v117
    %v119 = vmul.f32 %v116, %v117
    %v120 = vadd.f32 %v88, %v118
    %v121 = vadd.f32 %v89, %v119
    %s122 = scalar_lea.vmem %s0, 128
    %v123 = vld [vmem:[%s122] sm:$0xff]
    %v124 = vld [vmem:[%s122 + $0x8] sm:$0xff]
    %v125 = vperm.slane %v56, 0
    %v126 = vmul.f32 %v123, %v125
    %v127 = vmul.f32 %v124, %v125
    %v128 = vadd.f32 %v96, %v126
    %v129 = vadd.f32 %v97, %v127
    %s130 = scalar_lea.vmem %s0, 144
    %v131 = vld [vmem:[%s130] sm:$0xff]
    %v132 = vld [vmem:[%s130 + $0x8] sm:$0xff]
    %v133 = vperm.slane %v56, 1
    %v134 = vmul.f32 %v131, %v133
    %v135 = vmul.f32 %v132, %v133
    %v136 = vadd.f32 %v104, %v134
    %v137 = vadd.f32 %v105, %v135
    %s138 = scalar_lea.vmem %s0, 160
    %v139 = vld [vmem:[%s138] sm:$0xff]
    %v140 = vld [vmem:[%s138 + $0x8] sm:$0xff]
    %v141 = vperm.slane %v56, 2
    %v142 = vmul.f32 %v139, %v141
    %v143 = vmul.f32 %v140, %v141
    %v144 = vadd.f32 %v112, %v142
    %v145 = vadd.f32 %v113, %v143
    %s146 = scalar_lea.vmem %s0, 176
    %v147 = vld [vmem:[%s146] sm:$0xff]
    %v148 = vld [vmem:[%s146 + $0x8] sm:$0xff]
    %v149 = vperm.slane %v56, 3
    %v150 = vmul.f32 %v147, %v149
    %v151 = vmul.f32 %v148, %v149
    %v152 = vadd.f32 %v120, %v150
    %v153 = vadd.f32 %v121, %v151
    %s154 = scalar_lea.vmem %s0, 192
    %v155 = vld [vmem:[%s154] sm:$0xff]
    %v156 = vld [vmem:[%s154 + $0x8] sm:$0xff]
    %v157 = vperm.slane %v56, 4
    %v158 = vmul.f32 %v155, %v157
    %v159 = vmul.f32 %v156, %v157
    %v160 = vadd.f32 %v128, %v158
    %v161 = vadd.f32 %v129, %v159
    %s162 = scalar_lea.vmem %s0, 208
    %v163 = vld [vmem:[%s162] sm:$0xff]
    %v164 = vld [vmem:[%s162 + $0x8] sm:$0xff]
    %v165 = vperm.slane %v56, 5
    %v166 = vmul.f32 %v163, %v165
    %v167 = vmul.f32 %v164, %v165
    %v168 = vadd.f32 %v136, %v166
    %v169 = vadd.f32 %v137, %v167
    %s170 = scalar_lea.vmem %s0, 224
    %v171 = vld [vmem:[%s170] sm:$0xff]
    %v172 = vld [vmem:[%s170 + $0x8] sm:$0xff]
    %v173 = vperm.slane %v56, 6
    %v174 = vmul.f32 %v171, %v173
    %v175 = vmul.f32 %v172, %v173
    %v176 = vadd.f32 %v144, %v174
    %v177 = vadd.f32 %v145, %v175
    %s178 = scalar_lea.vmem %s0, 240
    %v179 = vld [vmem:[%s178] sm:$0xff]
    %v180 = vld [vmem:[%s178 + $0x8] sm:$0xff]
    %v181 = vperm.slane %v56, 7
    %v182 = vmul.f32 %v179, %v181
    %v183 = vmul.f32 %v180, %v181
    %v184 = vadd.f32 %v152, %v182
    %v185 = vadd.f32 %v153, %v183
    %v186 = vadd.f32 %v160, %v168
    %v187 = vadd.f32 %v161, %v169
    %v188 = vadd.f32 %v186, %v176
    %v189 = vadd.f32 %v187, %v177
    %v190 = vadd.f32 %v188, %v184
    %v191 = vadd.f32 %v189, %v185
    %v192 = vadd.f32 %v190, %v46
    %v193 = vadd.f32 %v191, %v47
    %v194 = vld [vmem:[%s2] sm:$0xff]
    %v195 = vld [vmem:[%s2 + $0x8] sm:$0xff]
    %v196 = vmax.f32 %v192, %v194
    %v197 = vmax.f32 %v193, %v195
    %v198 = vld [vmem:[%s3] sm:$0xff]
    %v199 = vld [vmem:[%s3 + $0x8] sm:$0xff]
    %v200 = vmin.f32 %v196, %v198
    %v201 = vmin.f32 %v197, %v199
    %v202 = vsub.f32 %v190, %v200
    %v203 = vsub.f32 %v191, %v201
    %v204 = vadd.f32 %v46, %v202
    %v205 = vadd.f32 %v47, %v203
    %v206 = vmul.f32 %v202, %v202
    %v207 = vmul.f32 %v203, %v203
    %vm208 = vcmask 15360
    %v209 = vsel %vm208, %v206, 0.0
    %v210 = vsel %vm208, %v207, 0.0
    %v211 = vadd.f32 %v209, %v210
    %v212 = vrot.slane %v211, 4
    %v213 = vadd.f32 %v211, %v212
    %v214 = vrot.slane %v213, 2
    %v215 = vadd.f32 %v213, %v214
    %v216 = vrot.slane %v215, 1
    %v217 = vadd.f32 %v215, %v216
    %v218 = vrsqrt.pop %v217
    %v219 = vmul.f32 %v218, %v217
    %v220 = vmul.f32 %v219, %v218
    %v221 = vmul.f32 0.5, %v220
    %v222 = vsub.f32 1.5, %v221
    %v223 = vmul.f32 %v218, %v222
    %v224 = vmul.f32 %v217, %v223
    %vm225 = vcmp.eq.f32.partialorder %v217, inf
    %v226 = vsel %vm225, %v217, %v224
    %vm227 = vcmp.eq.f32.partialorder %v217, 0.0
    %v228 = vand.u32 %v217, 2147483648
    %v229 = vsel %vm227, %v228, %v226
    %vm230 = vcmask 8192
    %v231 = vsel %vm230, %v229, 0.0
    %232 = vadd.xlane.f32.xlu0 %v231
    %v233 = vpop.xlane.xlu0 %232
    %v234 = vrot.slane %v233, 4
    %v235 = vadd.f32 %v233, %v234
    %v236 = vrot.slane %v235, 2
    %v237 = vadd.f32 %v235, %v236
    %v238 = vrot.slane %v237, 1
    %v239 = vadd.f32 %v237, %v238
    %s240 = vtos %v239
    %s241 = smul.f32 %s240, %s39
    %v242 = vsub.f32 %v200, %v44
    %v243 = vsub.f32 %v201, %v45
    %v244 = vmul.f32 %v242, %v242
    %v245 = vmul.f32 %v243, %v243
    %v246 = vsel %vm208, %v244, 0.0
    %v247 = vsel %vm208, %v245, 0.0
    %v248 = vadd.f32 %v246, %v247
    %v249 = vrot.slane %v248, 4
    %v250 = vadd.f32 %v248, %v249
    %v251 = vrot.slane %v250, 2
    %v252 = vadd.f32 %v250, %v251
    %v253 = vrot.slane %v252, 1
    %v254 = vadd.f32 %v252, %v253
    %v255 = vrsqrt.pop %v254
    %v256 = vmul.f32 %v255, %v254
    %v257 = vmul.f32 %v256, %v255
    %v258 = vmul.f32 0.5, %v257
    %v259 = vsub.f32 1.5, %v258
    %v260 = vmul.f32 %v255, %v259
    %v261 = vmul.f32 %v254, %v260
    %vm262 = vcmp.eq.f32.partialorder %v254, inf
    %v263 = vsel %vm262, %v254, %v261
    %vm264 = vcmp.eq.f32.partialorder %v254, 0.0
    %v265 = vand.u32 %v254, 2147483648
    %v266 = vsel %vm264, %v265, %v263
    %v267 = vsel %vm230, %v266, 0.0
    %268 = vadd.xlane.f32.xlu0 %v267
    %v269 = vpop.xlane.xlu0 %268
    %v270 = vrot.slane %v269, 4
    %v271 = vadd.f32 %v269, %v270
    %v272 = vrot.slane %v271, 2
    %v273 = vadd.f32 %v271, %v272
    %v274 = vrot.slane %v273, 1
    %v275 = vadd.f32 %v273, %v274
    %s276 = vtos %v275
    %s277 = smul.f32 %s276, %s39
    %v278 = vmul.f32 %v190, %v190
    %v279 = vmul.f32 %v191, %v191
    %v280 = vsel %vm208, %v278, 0.0
    %v281 = vsel %vm208, %v279, 0.0
    %v282 = vadd.f32 %v280, %v281
    %v283 = vrot.slane %v282, 4
    %v284 = vadd.f32 %v282, %v283
    %v285 = vrot.slane %v284, 2
    %v286 = vadd.f32 %v284, %v285
    %v287 = vrot.slane %v286, 1
    %v288 = vadd.f32 %v286, %v287
    %v289 = vrsqrt.pop %v288
    %v290 = vmul.f32 %v289, %v288
    %v291 = vmul.f32 %v290, %v289
    %v292 = vmul.f32 0.5, %v291
    %v293 = vsub.f32 1.5, %v292
    %v294 = vmul.f32 %v289, %v293
    %v295 = vmul.f32 %v288, %v294
    %vm296 = vcmp.eq.f32.partialorder %v288, inf
    %v297 = vsel %vm296, %v288, %v295
    %vm298 = vcmp.eq.f32.partialorder %v288, 0.0
    %v299 = vand.u32 %v288, 2147483648
    %v300 = vsel %vm298, %v299, %v297
    %v301 = vsel %vm230, %v300, 0.0
    %302 = vadd.xlane.f32.xlu0 %v301
    %v303 = vpop.xlane.xlu0 %302
    %v304 = vrot.slane %v303, 4
    %v305 = vadd.f32 %v303, %v304
    %v306 = vrot.slane %v305, 2
    %v307 = vadd.f32 %v305, %v306
    %v308 = vrot.slane %v307, 1
    %v309 = vadd.f32 %v307, %v308
    %s310 = vtos %v309
    %s311 = smul.f32 %s310, %s39
    %v312 = vmul.f32 %v200, %v200
    %v313 = vmul.f32 %v201, %v201
    %v314 = vsel %vm208, %v312, 0.0
    %v315 = vsel %vm208, %v313, 0.0
    %v316 = vadd.f32 %v314, %v315
    %v317 = vrot.slane %v316, 4
    %v318 = vadd.f32 %v316, %v317
    %v319 = vrot.slane %v318, 2
    %v320 = vadd.f32 %v318, %v319
    %v321 = vrot.slane %v320, 1
    %v322 = vadd.f32 %v320, %v321
    %v323 = vrsqrt.pop %v322
    %v324 = vmul.f32 %v323, %v322
    %v325 = vmul.f32 %v324, %v323
    %v326 = vmul.f32 0.5, %v325
    %v327 = vsub.f32 1.5, %v326
    %v328 = vmul.f32 %v323, %v327
    %v329 = vmul.f32 %v322, %v328
    %vm330 = vcmp.eq.f32.partialorder %v322, inf
    %v331 = vsel %vm330, %v322, %v329
    %vm332 = vcmp.eq.f32.partialorder %v322, 0.0
    %v333 = vand.u32 %v322, 2147483648
    %v334 = vsel %vm332, %v333, %v331
    %v335 = vsel %vm230, %v334, 0.0
    %336 = vadd.xlane.f32.xlu0 %v335
    %v337 = vpop.xlane.xlu0 %336
    %v338 = vrot.slane %v337, 4
    %v339 = vadd.f32 %v337, %v338
    %v340 = vrot.slane %v339, 2
    %v341 = vadd.f32 %v339, %v340
    %v342 = vrot.slane %v341, 1
    %v343 = vadd.f32 %v341, %v342
    %s344 = vtos %v343
    %s345 = smul.f32 %s344, %s39
    %v346 = vmul.f32 %v55, %v55
    %v347 = vmul.f32 %v56, %v56
    %v348 = vsel %vm208, %v346, 0.0
    %v349 = vsel %vm208, %v347, 0.0
    %v350 = vadd.f32 %v348, %v349
    %v351 = vrot.slane %v350, 4
    %v352 = vadd.f32 %v350, %v351
    %v353 = vrot.slane %v352, 2
    %v354 = vadd.f32 %v352, %v353
    %v355 = vrot.slane %v354, 1
    %v356 = vadd.f32 %v354, %v355
    %v357 = vrsqrt.pop %v356
    %v358 = vmul.f32 %v357, %v356
    %v359 = vmul.f32 %v358, %v357
    %v360 = vmul.f32 0.5, %v359
    %v361 = vsub.f32 1.5, %v360
    %v362 = vmul.f32 %v357, %v361
    %v363 = vmul.f32 %v356, %v362
    %vm364 = vcmp.eq.f32.partialorder %v356, inf
    %v365 = vsel %vm364, %v356, %v363
    %vm366 = vcmp.eq.f32.partialorder %v356, 0.0
    %v367 = vand.u32 %v356, 2147483648
    %v368 = vsel %vm366, %v367, %v365
    %v369 = vsel %vm230, %v368, 0.0
    %370 = vadd.xlane.f32.xlu0 %v369
    %v371 = vpop.xlane.xlu0 %370
    %v372 = vrot.slane %v371, 4
    %v373 = vadd.f32 %v371, %v372
    %v374 = vrot.slane %v373, 2
    %v375 = vadd.f32 %v373, %v374
    %v376 = vrot.slane %v375, 1
    %v377 = vadd.f32 %v375, %v376
    %s378 = vtos %v377
    %s379 = smul.f32 %s378, %s39
    %s380 = smax.f32 %s311, %s345
    %s381 = smul.f32 %s380, 0.001
    %s382 = sadd.f32 %s381, 0.004
    %s383 = smul.f32 %s379, 0.001
    %s384 = sadd.f32 %s383, 0.004
    %p385 = scmp.lt.f32.partialorder %s241, %s382
    %p386 = scmp.lt.f32.partialorder %s277, %s384
    %p387 = pnand %p385, %p386
    %p388 = pneg %p387
    %s389 = scalar_select %p388, 1, 0
    %s390 = sadd.s32 %s41, 1
  $region22: #{tpu_custom_call.1} parent=0 // loop_footer
    _
  $region23: #{tpu_custom_call.1} parent=0 // loop_footer_branch
    %40 = sbr.rel target = $region19
  $region24: #{tpu_custom_call.1} parent=0 // loop_exit
    _
  %vm391 = vcmask 15360
  %392 = vst.msk [vmem:[%s4] sm:$0xff] %vm391, %v42
  %393 = vst.msk [vmem:[%s4 + $0x8] sm:$0xff] %vm391, %v43
  // Predicated region
  $region25: #{tpu_custom_call.1} parent=0 // pred_check
    _
  $region26: #{tpu_custom_call.1} parent=0 // pred_check_branch
    %395 = sbr.rel (0) target = $region28
  $region27: #{tpu_custom_call.1} parent=0 // pred_region
    _
  $region28: #{tpu_custom_call.1} parent=0 // pred_fallthru
    _
  // Predicated region
  $region29: #{tpu_custom_call.1} parent=0 // pred_check
    _
  $region30: #{tpu_custom_call.1} parent=0 // pred_check_branch
    %397 = sbr.rel (0) target = $region32
  $region31: #{tpu_custom_call.1} parent=0 // pred_region
    _
  $region32: #{tpu_custom_call.1} parent=0 // pred_fallthru
    _

// kernel: tpu_custom_call.1
$region0: #{tpu_custom_call.1}
  #allocation0 [shape = 'u32[]', space=smem, size = 0x4, offset = 0x4, fixed_abs, tag = 'smem constant byte address 0x4 - core index']
  #allocation1 [shape = 'u32[72,128]{1,0:T(1,128)}', space=vmem, size = 0x9000, scoped, tag = 'internal scratch']
  %s0 = inlined_call_operand.vmem [shape: f32[16,16,2], index: 0, kind: input, shape index: {}]
  %s1 = inlined_call_operand.vmem [shape: f32[16,2], index: 1, kind: input, shape index: {}]
  %s2 = inlined_call_operand.vmem [shape: f32[16,2], index: 2, kind: input, shape index: {}]
  %s3 = inlined_call_operand.vmem [shape: f32[16,2], index: 3, kind: input, shape index: {}]
  %s4 = inlined_call_operand.vmem [shape: f32[16,2], index: 4, kind: output, shape index: {}]
  %s5 = sld [smem:[#allocation0]]
  $region33: #{tpu_custom_call.1} parent=0
    _
  %s7 = ssub.s32 1, %s5
  %s8 = scalar_select 0, %s7, %s5
  // Predicated region
  $region2: #{tpu_custom_call.1} parent=0 // pred_check
    _
  $region3: #{tpu_custom_call.1} parent=0 // pred_check_branch
    %10 = sbr.rel (0) target = $region5
  $region4: #{tpu_custom_call.1} parent=0 // pred_region
    _
  $region5: #{tpu_custom_call.1} parent=0 // pred_fallthru
    _
  // Predicated region
  $region6: #{tpu_custom_call.1} parent=0 // pred_check
    _
  $region7: #{tpu_custom_call.1} parent=0 // pred_check_branch
    %12 = sbr.rel (0) target = $region9
  $region8: #{tpu_custom_call.1} parent=0 // pred_region
    _
  $region9: #{tpu_custom_call.1} parent=0 // pred_fallthru
    _
  // Predicated region
  $region10: #{tpu_custom_call.1} parent=0 // pred_check
    _
  $region11: #{tpu_custom_call.1} parent=0 // pred_check_branch
    %14 = sbr.rel (0) target = $region13
  $region12: #{tpu_custom_call.1} parent=0 // pred_region
    _
  $region13: #{tpu_custom_call.1} parent=0 // pred_fallthru
    _
  // Predicated region
  $region14: #{tpu_custom_call.1} parent=0 // pred_check
    _
  $region15: #{tpu_custom_call.1} parent=0 // pred_check_branch
    %16 = sbr.rel (0) target = $region17
  $region16: #{tpu_custom_call.1} parent=0 // pred_region
    _
  $region17: #{tpu_custom_call.1} parent=0 // pred_fallthru
    _
  %s17 = smul.u32 0, 2
  %s18 = ssub.s32 2, %s17
  %p19 = scmp.gt.s32.totalorder %s18, 1
  %s20 = scalar_select %p19, %s18, 1
  %p21 = scmp.lt.s32.totalorder %s20, 2
  %s22 = scalar_select %p21, %s20, 2
  %s23 = scvt.s32.f32 %s22
  %v24 = vstv %s23
  %v25 = vrcp.pop %v24
  %v26 = vmul.f32 %v24, %v25
  %v27 = vsub.f32 1.0, %v26
  %v28 = vmul.f32 %v25, %v27
  %v29 = vadd.f32 %v25, %v28
  %vm30 = vweird.f32 %v24
  %vm31 = vweird.f32 %v25
  %vm32 = vmor %vm30, %vm31
  %v33 = vsel %vm32, %v25, %v29
  %v34 = vand.u32 2147483647, %v24
  %vm35 = vcmp.eq.f32.partialorder %v34, 8.507059e+37
  %v36 = vand.u32 %v24, 2147483648
  %v37 = vor.u32 1.1754944e-38, %v36
  %v38 = vsel %vm35, %v37, %v33
  %s39 = vtos %v38
  // While loop
  $region18: #{tpu_custom_call.1} parent=0 // loop_pre_header
    _
  $region19: #{tpu_custom_call.1} parent=0 // loop_header
    %s41 = sphi 0, %s390
    %v42 = vphi 0.0, %v190
    %v43 = vphi 0.0, %v191
    %v44 = vphi 0.0, %v200
    %v45 = vphi 0.0, %v201
    %v46 = vphi 0.0, %v204
    %v47 = vphi 0.0, %v205
    %s48 = sphi 0, %s389
    %p49 = scmp.lt.s32.totalorder %s41, 200
    %p50 = scmp.eq.s32.totalorder %s48, 0
    %p51 = pnand %p49, %p50
    %p52 = pneg %p51
  $region20: #{tpu_custom_call.1} parent=0 // loop_header_branch
    %54 = sbr.rel (%p51) target = $region24
  $region21: #{tpu_custom_call.1} parent=0 // loop_body
    %v55 = vsub.f32 %v44, %v46
    %v56 = vsub.f32 %v45, %v47
    %v57 = vld [vmem:[%s1] sm:$0xff]
    %v58 = vld [vmem:[%s1 + $0x8] sm:$0xff]
    %v59 = vld [vmem:[%s0] sm:$0xff]
    %v60 = vld [vmem:[%s0 + $0x8] sm:$0xff]
    %v61 = vperm.slane %v55, 0
    %v62 = vmul.f32 %v59, %v61
    %v63 = vmul.f32 %v60, %v61
    %v64 = vadd.f32 %v57, %v62
    %v65 = vadd.f32 %v58, %v63
    %s66 = scalar_lea.vmem %s0, 16
    %v67 = vld [vmem:[%s66] sm:$0xff]
    %v68 = vld [vmem:[%s66 + $0x8] sm:$0xff]
    %v69 = vperm.slane %v55, 1
    %v70 = vmul.f32 %v67, %v69
    %v71 = vmul.f32 %v68, %v69
    %v72 = vadd.f32 %v70, 0.0
    %v73 = vadd.f32 %v71, 0.0
    %s74 = scalar_lea.vmem %s0, 32
    %v75 = vld [vmem:[%s74] sm:$0xff]
    %v76 = vld [vmem:[%s74 + $0x8] sm:$0xff]
    %v77 = vperm.slane %v55, 2
    %v78 = vmul.f32 %v75, %v77
    %v79 = vmul.f32 %v76, %v77
    %v80 = vadd.f32 %v78, 0.0
    %v81 = vadd.f32 %v79, 0.0
    %s82 = scalar_lea.vmem %s0, 48
    %v83 = vld [vmem:[%s82] sm:$0xff]
    %v84 = vld [vmem:[%s82 + $0x8] sm:$0xff]
    %v85 = vperm.slane %v55, 3
    %v86 = vmul.f32 %v83, %v85
    %v87 = vmul.f32 %v84, %v85
    %v88 = vadd.f32 %v86, 0.0
    %v89 = vadd.f32 %v87, 0.0
    %s90 = scalar_lea.vmem %s0, 64
    %v91 = vld [vmem:[%s90] sm:$0xff]
    %v92 = vld [vmem:[%s90 + $0x8] sm:$0xff]
    %v93 = vperm.slane %v55, 4
    %v94 = vmul.f32 %v91, %v93
    %v95 = vmul.f32 %v92, %v93
    %v96 = vadd.f32 %v64, %v94
    %v97 = vadd.f32 %v65, %v95
    %s98 = scalar_lea.vmem %s0, 80
    %v99 = vld [vmem:[%s98] sm:$0xff]
    %v100 = vld [vmem:[%s98 + $0x8] sm:$0xff]
    %v101 = vperm.slane %v55, 5
    %v102 = vmul.f32 %v99, %v101
    %v103 = vmul.f32 %v100, %v101
    %v104 = vadd.f32 %v72, %v102
    %v105 = vadd.f32 %v73, %v103
    %s106 = scalar_lea.vmem %s0, 96
    %v107 = vld [vmem:[%s106] sm:$0xff]
    %v108 = vld [vmem:[%s106 + $0x8] sm:$0xff]
    %v109 = vperm.slane %v55, 6
    %v110 = vmul.f32 %v107, %v109
    %v111 = vmul.f32 %v108, %v109
    %v112 = vadd.f32 %v80, %v110
    %v113 = vadd.f32 %v81, %v111
    %s114 = scalar_lea.vmem %s0, 112
    %v115 = vld [vmem:[%s114] sm:$0xff]
    %v116 = vld [vmem:[%s114 + $0x8] sm:$0xff]
    %v117 = vperm.slane %v55, 7
    %v118 = vmul.f32 %v115, %v117
    %v119 = vmul.f32 %v116, %v117
    %v120 = vadd.f32 %v88, %v118
    %v121 = vadd.f32 %v89, %v119
    %s122 = scalar_lea.vmem %s0, 128
    %v123 = vld [vmem:[%s122] sm:$0xff]
    %v124 = vld [vmem:[%s122 + $0x8] sm:$0xff]
    %v125 = vperm.slane %v56, 0
    %v126 = vmul.f32 %v123, %v125
    %v127 = vmul.f32 %v124, %v125
    %v128 = vadd.f32 %v96, %v126
    %v129 = vadd.f32 %v97, %v127
    %s130 = scalar_lea.vmem %s0, 144
    %v131 = vld [vmem:[%s130] sm:$0xff]
    %v132 = vld [vmem:[%s130 + $0x8] sm:$0xff]
    %v133 = vperm.slane %v56, 1
    %v134 = vmul.f32 %v131, %v133
    %v135 = vmul.f32 %v132, %v133
    %v136 = vadd.f32 %v104, %v134
    %v137 = vadd.f32 %v105, %v135
    %s138 = scalar_lea.vmem %s0, 160
    %v139 = vld [vmem:[%s138] sm:$0xff]
    %v140 = vld [vmem:[%s138 + $0x8] sm:$0xff]
    %v141 = vperm.slane %v56, 2
    %v142 = vmul.f32 %v139, %v141
    %v143 = vmul.f32 %v140, %v141
    %v144 = vadd.f32 %v112, %v142
    %v145 = vadd.f32 %v113, %v143
    %s146 = scalar_lea.vmem %s0, 176
    %v147 = vld [vmem:[%s146] sm:$0xff]
    %v148 = vld [vmem:[%s146 + $0x8] sm:$0xff]
    %v149 = vperm.slane %v56, 3
    %v150 = vmul.f32 %v147, %v149
    %v151 = vmul.f32 %v148, %v149
    %v152 = vadd.f32 %v120, %v150
    %v153 = vadd.f32 %v121, %v151
    %s154 = scalar_lea.vmem %s0, 192
    %v155 = vld [vmem:[%s154] sm:$0xff]
    %v156 = vld [vmem:[%s154 + $0x8] sm:$0xff]
    %v157 = vperm.slane %v56, 4
    %v158 = vmul.f32 %v155, %v157
    %v159 = vmul.f32 %v156, %v157
    %v160 = vadd.f32 %v128, %v158
    %v161 = vadd.f32 %v129, %v159
    %s162 = scalar_lea.vmem %s0, 208
    %v163 = vld [vmem:[%s162] sm:$0xff]
    %v164 = vld [vmem:[%s162 + $0x8] sm:$0xff]
    %v165 = vperm.slane %v56, 5
    %v166 = vmul.f32 %v163, %v165
    %v167 = vmul.f32 %v164, %v165
    %v168 = vadd.f32 %v136, %v166
    %v169 = vadd.f32 %v137, %v167
    %s170 = scalar_lea.vmem %s0, 224
    %v171 = vld [vmem:[%s170] sm:$0xff]
    %v172 = vld [vmem:[%s170 + $0x8] sm:$0xff]
    %v173 = vperm.slane %v56, 6
    %v174 = vmul.f32 %v171, %v173
    %v175 = vmul.f32 %v172, %v173
    %v176 = vadd.f32 %v144, %v174
    %v177 = vadd.f32 %v145, %v175
    %s178 = scalar_lea.vmem %s0, 240
    %v179 = vld [vmem:[%s178] sm:$0xff]
    %v180 = vld [vmem:[%s178 + $0x8] sm:$0xff]
    %v181 = vperm.slane %v56, 7
    %v182 = vmul.f32 %v179, %v181
    %v183 = vmul.f32 %v180, %v181
    %v184 = vadd.f32 %v152, %v182
    %v185 = vadd.f32 %v153, %v183
    %v186 = vadd.f32 %v160, %v168
    %v187 = vadd.f32 %v161, %v169
    %v188 = vadd.f32 %v186, %v176
    %v189 = vadd.f32 %v187, %v177
    %v190 = vadd.f32 %v188, %v184
    %v191 = vadd.f32 %v189, %v185
    %v192 = vadd.f32 %v190, %v46
    %v193 = vadd.f32 %v191, %v47
    %v194 = vld [vmem:[%s2] sm:$0xff]
    %v195 = vld [vmem:[%s2 + $0x8] sm:$0xff]
    %v196 = vmax.f32 %v192, %v194
    %v197 = vmax.f32 %v193, %v195
    %v198 = vld [vmem:[%s3] sm:$0xff]
    %v199 = vld [vmem:[%s3 + $0x8] sm:$0xff]
    %v200 = vmin.f32 %v196, %v198
    %v201 = vmin.f32 %v197, %v199
    %v202 = vsub.f32 %v190, %v200
    %v203 = vsub.f32 %v191, %v201
    %v204 = vadd.f32 %v46, %v202
    %v205 = vadd.f32 %v47, %v203
    %v206 = vmul.f32 %v202, %v202
    %v207 = vmul.f32 %v203, %v203
    %vm208 = vcmask 15360
    %v209 = vsel %vm208, %v206, 0.0
    %v210 = vsel %vm208, %v207, 0.0
    %v211 = vadd.f32 %v209, %v210
    %v212 = vrot.slane %v211, 4
    %v213 = vadd.f32 %v211, %v212
    %v214 = vrot.slane %v213, 2
    %v215 = vadd.f32 %v213, %v214
    %v216 = vrot.slane %v215, 1
    %v217 = vadd.f32 %v215, %v216
    %v218 = vrsqrt.pop %v217
    %v219 = vmul.f32 %v218, %v217
    %v220 = vmul.f32 %v219, %v218
    %v221 = vmul.f32 0.5, %v220
    %v222 = vsub.f32 1.5, %v221
    %v223 = vmul.f32 %v218, %v222
    %v224 = vmul.f32 %v217, %v223
    %vm225 = vcmp.eq.f32.partialorder %v217, inf
    %v226 = vsel %vm225, %v217, %v224
    %vm227 = vcmp.eq.f32.partialorder %v217, 0.0
    %v228 = vand.u32 %v217, 2147483648
    %v229 = vsel %vm227, %v228, %v226
    %vm230 = vcmask 8192
    %v231 = vsel %vm230, %v229, 0.0
    %232 = vadd.xlane.f32.xlu0 %v231
    %v233 = vpop.xlane.xlu0 %232
    %v234 = vrot.slane %v233, 4
    %v235 = vadd.f32 %v233, %v234
    %v236 = vrot.slane %v235, 2
    %v237 = vadd.f32 %v235, %v236
    %v238 = vrot.slane %v237, 1
    %v239 = vadd.f32 %v237, %v238
    %s240 = vtos %v239
    %s241 = smul.f32 %s240, %s39
    %v242 = vsub.f32 %v200, %v44
    %v243 = vsub.f32 %v201, %v45
    %v244 = vmul.f32 %v242, %v242
    %v245 = vmul.f32 %v243, %v243
    %v246 = vsel %vm208, %v244, 0.0
    %v247 = vsel %vm208, %v245, 0.0
    %v248 = vadd.f32 %v246, %v247
    %v249 = vrot.slane %v248, 4
    %v250 = vadd.f32 %v248, %v249
    %v251 = vrot.slane %v250, 2
    %v252 = vadd.f32 %v250, %v251
    %v253 = vrot.slane %v252, 1
    %v254 = vadd.f32 %v252, %v253
    %v255 = vrsqrt.pop %v254
    %v256 = vmul.f32 %v255, %v254
    %v257 = vmul.f32 %v256, %v255
    %v258 = vmul.f32 0.5, %v257
    %v259 = vsub.f32 1.5, %v258
    %v260 = vmul.f32 %v255, %v259
    %v261 = vmul.f32 %v254, %v260
    %vm262 = vcmp.eq.f32.partialorder %v254, inf
    %v263 = vsel %vm262, %v254, %v261
    %vm264 = vcmp.eq.f32.partialorder %v254, 0.0
    %v265 = vand.u32 %v254, 2147483648
    %v266 = vsel %vm264, %v265, %v263
    %v267 = vsel %vm230, %v266, 0.0
    %268 = vadd.xlane.f32.xlu0 %v267
    %v269 = vpop.xlane.xlu0 %268
    %v270 = vrot.slane %v269, 4
    %v271 = vadd.f32 %v269, %v270
    %v272 = vrot.slane %v271, 2
    %v273 = vadd.f32 %v271, %v272
    %v274 = vrot.slane %v273, 1
    %v275 = vadd.f32 %v273, %v274
    %s276 = vtos %v275
    %s277 = smul.f32 %s276, %s39
    %v278 = vmul.f32 %v190, %v190
    %v279 = vmul.f32 %v191, %v191
    %v280 = vsel %vm208, %v278, 0.0
    %v281 = vsel %vm208, %v279, 0.0
    %v282 = vadd.f32 %v280, %v281
    %v283 = vrot.slane %v282, 4
    %v284 = vadd.f32 %v282, %v283
    %v285 = vrot.slane %v284, 2
    %v286 = vadd.f32 %v284, %v285
    %v287 = vrot.slane %v286, 1
    %v288 = vadd.f32 %v286, %v287
    %v289 = vrsqrt.pop %v288
    %v290 = vmul.f32 %v289, %v288
    %v291 = vmul.f32 %v290, %v289
    %v292 = vmul.f32 0.5, %v291
    %v293 = vsub.f32 1.5, %v292
    %v294 = vmul.f32 %v289, %v293
    %v295 = vmul.f32 %v288, %v294
    %vm296 = vcmp.eq.f32.partialorder %v288, inf
    %v297 = vsel %vm296, %v288, %v295
    %vm298 = vcmp.eq.f32.partialorder %v288, 0.0
    %v299 = vand.u32 %v288, 2147483648
    %v300 = vsel %vm298, %v299, %v297
    %v301 = vsel %vm230, %v300, 0.0
    %302 = vadd.xlane.f32.xlu0 %v301
    %v303 = vpop.xlane.xlu0 %302
    %v304 = vrot.slane %v303, 4
    %v305 = vadd.f32 %v303, %v304
    %v306 = vrot.slane %v305, 2
    %v307 = vadd.f32 %v305, %v306
    %v308 = vrot.slane %v307, 1
    %v309 = vadd.f32 %v307, %v308
    %s310 = vtos %v309
    %s311 = smul.f32 %s310, %s39
    %v312 = vmul.f32 %v200, %v200
    %v313 = vmul.f32 %v201, %v201
    %v314 = vsel %vm208, %v312, 0.0
    %v315 = vsel %vm208, %v313, 0.0
    %v316 = vadd.f32 %v314, %v315
    %v317 = vrot.slane %v316, 4
    %v318 = vadd.f32 %v316, %v317
    %v319 = vrot.slane %v318, 2
    %v320 = vadd.f32 %v318, %v319
    %v321 = vrot.slane %v320, 1
    %v322 = vadd.f32 %v320, %v321
    %v323 = vrsqrt.pop %v322
    %v324 = vmul.f32 %v323, %v322
    %v325 = vmul.f32 %v324, %v323
    %v326 = vmul.f32 0.5, %v325
    %v327 = vsub.f32 1.5, %v326
    %v328 = vmul.f32 %v323, %v327
    %v329 = vmul.f32 %v322, %v328
    %vm330 = vcmp.eq.f32.partialorder %v322, inf
    %v331 = vsel %vm330, %v322, %v329
    %vm332 = vcmp.eq.f32.partialorder %v322, 0.0
    %v333 = vand.u32 %v322, 2147483648
    %v334 = vsel %vm332, %v333, %v331
    %v335 = vsel %vm230, %v334, 0.0
    %336 = vadd.xlane.f32.xlu0 %v335
    %v337 = vpop.xlane.xlu0 %336
    %v338 = vrot.slane %v337, 4
    %v339 = vadd.f32 %v337, %v338
    %v340 = vrot.slane %v339, 2
    %v341 = vadd.f32 %v339, %v340
    %v342 = vrot.slane %v341, 1
    %v343 = vadd.f32 %v341, %v342
    %s344 = vtos %v343
    %s345 = smul.f32 %s344, %s39
    %v346 = vmul.f32 %v55, %v55
    %v347 = vmul.f32 %v56, %v56
    %v348 = vsel %vm208, %v346, 0.0
    %v349 = vsel %vm208, %v347, 0.0
    %v350 = vadd.f32 %v348, %v349
    %v351 = vrot.slane %v350, 4
    %v352 = vadd.f32 %v350, %v351
    %v353 = vrot.slane %v352, 2
    %v354 = vadd.f32 %v352, %v353
    %v355 = vrot.slane %v354, 1
    %v356 = vadd.f32 %v354, %v355
    %v357 = vrsqrt.pop %v356
    %v358 = vmul.f32 %v357, %v356
    %v359 = vmul.f32 %v358, %v357
    %v360 = vmul.f32 0.5, %v359
    %v361 = vsub.f32 1.5, %v360
    %v362 = vmul.f32 %v357, %v361
    %v363 = vmul.f32 %v356, %v362
    %vm364 = vcmp.eq.f32.partialorder %v356, inf
    %v365 = vsel %vm364, %v356, %v363
    %vm366 = vcmp.eq.f32.partialorder %v356, 0.0
    %v367 = vand.u32 %v356, 2147483648
    %v368 = vsel %vm366, %v367, %v365
    %v369 = vsel %vm230, %v368, 0.0
    %370 = vadd.xlane.f32.xlu0 %v369
    %v371 = vpop.xlane.xlu0 %370
    %v372 = vrot.slane %v371, 4
    %v373 = vadd.f32 %v371, %v372
    %v374 = vrot.slane %v373, 2
    %v375 = vadd.f32 %v373, %v374
    %v376 = vrot.slane %v375, 1
    %v377 = vadd.f32 %v375, %v376
    %s378 = vtos %v377
    %s379 = smul.f32 %s378, %s39
    %s380 = smax.f32 %s311, %s345
    %s381 = smul.f32 %s380, 0.001
    %s382 = sadd.f32 %s381, 0.004
    %s383 = smul.f32 %s379, 0.001
    %s384 = sadd.f32 %s383, 0.004
    %p385 = scmp.lt.f32.partialorder %s241, %s382
    %p386 = scmp.lt.f32.partialorder %s277, %s384
    %p387 = pnand %p385, %p386
    %p388 = pneg %p387
    %s389 = scalar_select %p388, 1, 0
    %s390 = sadd.s32 %s41, 1
  $region22: #{tpu_custom_call.1} parent=0 // loop_footer
    _
  $region23: #{tpu_custom_call.1} parent=0 // loop_footer_branch
    %40 = sbr.rel target = $region19
  $region24: #{tpu_custom_call.1} parent=0 // loop_exit
    _
  %vm391 = vcmask 15360
  %392 = vst.msk [vmem:[%s4] sm:$0xff] %vm391, %v42
  %393 = vst.msk [vmem:[%s4 + $0x8] sm:$0xff] %vm391, %v43
  // Predicated region
  $region25: #{tpu_custom_call.1} parent=0 // pred_check
    _
  $region26: #{tpu_custom_call.1} parent=0 // pred_check_branch
    %395 = sbr.rel (0) target = $region28
  $region27: #{tpu_custom_call.1} parent=0 // pred_region
    _
  $region28: #{tpu_custom_call.1} parent=0 // pred_fallthru
    _
  // Predicated region
  $region29: #{tpu_custom_call.1} parent=0 // pred_check
    _
  $region30: #{tpu_custom_call.1} parent=0 // pred_check_branch
    %397 = sbr.rel (0) target = $region32
  $region31: #{tpu_custom_call.1} parent=0 // pred_region
    _
  $region32: #{tpu_custom_call.1} parent=0 // pred_fallthru
    _

</llo_original>
